<compile_context>
chip_gen: v7x
topology: tpu7x:2x2x1
jax: 0.10.0
libtpu: 0.0.40
codegen_flags: <defaults>
</compile_context>

<pallas_src>
import jax
import jax.numpy as jnp
from jax.experimental import pallas as pl
from jax.experimental.pallas import tpu as pltpu

LEAK = 0.1
NUM_MATS = 7  # we0, we1, we2, (start_conv folded into wd0), wd1, wd2, wf


def _leaky_relu(x):
    return jnp.where(x >= 0, x, LEAK * x)


def _jpeg_kernel(x_ref, w_ref, b_ref, out_ref):
    x = x_ref[...].astype(jnp.float32)

    def conv(v, idx):
        # bf16 MXU operands, f32 accumulation; bias add stays in f32.
        acc = jnp.dot(v.astype(jnp.bfloat16), w_ref[idx],
                      preferred_element_type=jnp.float32)
        return acc + b_ref[idx]

    # encoder (keep skip outputs)
    s0 = _leaky_relu(conv(x, 0))
    s1 = _leaky_relu(conv(s0, 1))
    s2 = _leaky_relu(conv(s1, 2))

    # start_conv + first decoder block (skip = s2), folded into one matmul
    y = _leaky_relu(conv(s2, 3))

    # remaining decoder blocks with skips
    y = _leaky_relu(conv(y + s1, 4))
    y = _leaky_relu(conv(y + s0, 5))

    # final conv (no activation)
    y = conv(y, 6)

    out_ref[...] = y.astype(out_ref.dtype)


def _choose_tm(n_rows):
    # Prefer large row tiles (amortize ~0.35us per-step pipeline overhead and
    # MXU weight-load latency), but keep at least 4 grid steps so the
    # "parallel" axis can be split across TensorCores (v7x megacore).
    for tm in (1024, 512, 256, 128):
        if n_rows >= 4 * tm:
            return tm
    if n_rows >= 128:
        return 128
    return max(8, ((n_rows + 7) // 8) * 8)


def _to_rows(x, r):
    # NCHW -> (B*Hs*Ws, C*r*r); per-pixel channel order matches the
    # PixelUnshuffle(8) output channel order (c*r*r + i*r + j).
    B, C, H, W = x.shape
    Hs, Ws = H // r, W // r
    x = x.reshape(B, C, Hs, r, Ws, r)
    x = x.transpose(0, 2, 4, 1, 3, 5)            # (B, Hs, Ws, C, r, r)
    return x.reshape(B * Hs * Ws, C * r * r), (Hs, Ws)


def _from_rows(rows, B, C, Hs, Ws, r):
    # (B*Hs*Ws, C*r*r) -> NCHW output of PixelShuffle(8)
    x = rows.reshape(B, Hs, Ws, C, r, r)
    x = x.transpose(0, 3, 1, 4, 2, 5)            # (B, C, Hs, r, Ws, r)
    return x.reshape(B, C, Hs * r, Ws * r)


def jpeg_forward(x, params):
    """x: (B, C, H, W) float32 NCHW.  params: (Cin, Cout) weights, (1, Cout) biases."""
    r = 8
    B, C, H, W = x.shape
    Cb = C * r * r
    hi = jax.lax.Precision.HIGHEST

    # Fold start_conv into decoder block 0 (no nonlinearity in between):
    #   (s2 @ ws + bs + s2) @ wd0 + bd0 == s2 @ ((ws + I) @ wd0) + (bs @ wd0 + bd0)
    eye = jnp.eye(Cb, dtype=jnp.float32)
    w_fused = jnp.matmul(params["ws"] + eye, params["wd0"], precision=hi)
    b_fused = jnp.matmul(params["bs"], params["wd0"], precision=hi) + params["bd0"]

    w_list = [params["we0"], params["we1"], params["we2"],
              w_fused, params["wd1"], params["wd2"], params["wf"]]
    b_list = [params["be0"], params["be1"], params["be2"],
              b_fused, params["bd1"], params["bd2"], params["bf"]]

    # Zero-pad the channel dim to a multiple of 128 lanes (lane-dense
    # loads/stores, aligned MXU tiles).  LeakyReLU(0)=0 keeps padding inert.
    Cp = max(128, ((Cb + 127) // 128) * 128)
    pad_c = Cp - Cb
    w_stack = jnp.stack(
        [jnp.pad(w, ((0, pad_c), (0, pad_c))) for w in w_list]
    ).astype(jnp.bfloat16)                                      # (7, Cp, Cp) bf16
    b_stack = jnp.stack(
        [jnp.pad(b, ((0, 0), (0, pad_c))) for b in b_list]
    ).astype(jnp.float32)                                       # (7, 1, Cp) f32

    rows, (Hs, Ws) = _to_rows(x.astype(jnp.float32), r)
    N = rows.shape[0]
    TM = _choose_tm(N)
    N_pad = -(-N // TM) * TM
    # one combined pad (rows + channels); a no-op when nothing to pad
    rows = jnp.pad(rows, ((0, N_pad - N), (0, pad_c)))

    out_rows = pl.pallas_call(
        _jpeg_kernel,
        out_shape=jax.ShapeDtypeStruct((N_pad, Cp), jnp.float32),
        grid_spec=pltpu.PrefetchScalarGridSpec(
            num_scalar_prefetch=0,
            grid=(N_pad // TM,),
            in_specs=[
                pl.BlockSpec((TM, Cp), lambda i: (i, 0)),            # activations
                pl.BlockSpec((NUM_MATS, Cp, Cp), lambda i: (0, 0, 0)),  # all weights
                pl.BlockSpec((NUM_MATS, 1, Cp), lambda i: (0, 0, 0)),   # all biases
            ],
            out_specs=pl.BlockSpec((TM, Cp), lambda i: (i, 0)),
        ),
        compiler_params=pltpu.CompilerParams(
            dimension_semantics=("parallel",),
            vmem_limit_bytes=48 * 1024 * 1024,
        ),
    )(rows, w_stack, b_stack)

    out_rows = out_rows[:N, :Cb]
    return _from_rows(out_rows, B, C, Hs, Ws, r)


def jpeg_forward_ref(x, params):
    """Plain-JAX f32 reference of the unfused module math (for verification)."""
    r = 8
    B, C, H, W = x.shape
    hi = jax.lax.Precision.HIGHEST
    rows, (Hs, Ws) = _to_rows(x.astype(jnp.float32), r)

    def conv(v, w, b):
        return jnp.matmul(v, w, precision=hi) + b

    s0 = _leaky_relu(conv(rows, params["we0"], params["be0"]))
    s1 = _leaky_relu(conv(s0, params["we1"], params["be1"]))
    s2 = _leaky_relu(conv(s1, params["we2"], params["be2"]))
    y = conv(s2, params["ws"], params["bs"])
    y = _leaky_relu(conv(y + s2, params["wd0"], params["bd0"]))
    y = _leaky_relu(conv(y + s1, params["wd1"], params["bd1"]))
    y = _leaky_relu(conv(y + s0, params["wd2"], params["bd2"]))
    y = conv(y, params["wf"], params["bf"])
    return _from_rows(y, B, C, Hs, Ws, r)


def make_params(key, color_channels=3):
    """Deterministic synthetic parameters. 1x1 conv (Cout,Cin,1,1) stored as (Cin,Cout)."""
    Cb = color_channels * 64
    names_w = ["we0", "we1", "we2", "ws", "wd0", "wd1", "wd2", "wf"]
    params = {}
    keys = jax.random.split(key, 2 * len(names_w))
    scale = 1.0 / jnp.sqrt(Cb)
    for i, nw in enumerate(names_w):
        kw, kb = keys[2 * i], keys[2 * i + 1]
        params[nw] = jax.random.normal(kw, (Cb, Cb), jnp.float32) * scale
        params["b" + nw[1:]] = jax.random.normal(kb, (1, Cb), jnp.float32) * scale
    return params


if __name__ == "__main__":
    key = jax.random.PRNGKey(0)
    k_x, k_p = jax.random.split(key)

    # small shapes: batch=2, color_channels=3, spatial=16 (divisible by 8)
    B, C, H, W = 2, 3, 16, 16
    x = jax.random.normal(k_x, (B, C, H, W), jnp.float32)
    params = make_params(k_p, color_channels=C)

    fwd = jax.jit(jpeg_forward)
    out = fwd(x, params)
    jax.block_until_ready(out)

    ref = jpeg_forward_ref(x, params)
    assert out.shape == (B, C, H, W), out.shape
    max_err = float(jnp.max(jnp.abs(out - ref)))
    # bf16 MXU operands through 7 chained matmuls => loosened tolerance vs f32 ref
    assert jnp.allclose(out, ref, atol=1e-1, rtol=5e-2), f"mismatch, max_err={max_err}"

    print("KERNEL_OK")
</pallas_src>

<mosaic_0001>
module attributes {stable_mosaic.version = 11 : i64} {
  func.func @_jpeg_kernel(%arg0: i32, %arg1: memref<8x256xf32, #tpu.memory_space<vmem>>, %arg2: memref<7x256x256xbf16, #tpu.memory_space<vmem>>, %arg3: memref<7x1x256xf32, #tpu.memory_space<vmem>>, %arg4: memref<8x256xf32, #tpu.memory_space<vmem>>) attributes {dimension_semantics = [#tpu.dimension_semantics<parallel>], iteration_bounds = array<i64: 1>, scalar_prefetch = 0 : i64, scratch_operands = 0 : i64, tpu.core_type = #tpu.core_type<tc>, window_params = [{transform_indices = @transform_0, window_bounds = array<i64: 8, 256>}, {pipeline_mode = #tpu.pipeline_mode<synchronous>, transform_indices = @transform_1, window_bounds = array<i64: 7, 256, 256>}, {pipeline_mode = #tpu.pipeline_mode<synchronous>, transform_indices = @transform_2, window_bounds = array<i64: 7, 1, 256>}, {transform_indices = @transform_3, window_bounds = array<i64: 8, 256>}]} {
    %c0 = arith.constant 0 : index
    %c0_0 = arith.constant 0 : index
    %0 = vector.load %arg1[%c0, %c0_0] : memref<8x256xf32, #tpu.memory_space<vmem>>, vector<8x256xf32>
    %1 = arith.truncf %0 : vector<8x256xf32> to vector<8x256xbf16>
    %c0_1 = arith.constant 0 : index
    %c0_2 = arith.constant 0 : index
    %c0_3 = arith.constant 0 : index
    %2 = vector.load %arg2[%c0_1, %c0_2, %c0_3] : memref<7x256x256xbf16, #tpu.memory_space<vmem>>, vector<1x256x256xbf16>
    %3 = vector.shape_cast %2 : vector<1x256x256xbf16> to vector<256x256xbf16>
    %cst = arith.constant dense<0.000000e+00> : vector<8x256xf32>
    %4 = tpu.matmul %1, %3, %cst {dimension_numbers = #tpu.dot_dimension_numbers<[1], [0], [0], [1], [0, 0, 1, 1], [], []>} : vector<8x256xbf16>, vector<256x256xbf16>, vector<8x256xf32> -> vector<8x256xf32>
    %c0_4 = arith.constant 0 : index
    %c0_5 = arith.constant 0 : index
    %c0_6 = arith.constant 0 : index
    %5 = vector.load %arg3[%c0_4, %c0_5, %c0_6] : memref<7x1x256xf32, #tpu.memory_space<vmem>>, vector<1x1x256xf32>
    %6 = vector.shape_cast %5 : vector<1x1x256xf32> to vector<1x256xf32>
    %7 = vector.broadcast %6 : vector<1x256xf32> to vector<8x256xf32>
    %8 = arith.addf %4, %7 : vector<8x256xf32>
    %cst_7 = arith.constant 0.000000e+00 : f32
    %9 = vector.broadcast %cst_7 : f32 to vector<8x256xf32>
    %10 = arith.cmpf oge, %8, %9 : vector<8x256xf32>
    %cst_8 = arith.constant 1.000000e-01 : f32
    %11 = vector.broadcast %cst_8 : f32 to vector<8x256xf32>
    %12 = arith.mulf %11, %8 : vector<8x256xf32>
    %13 = arith.select %10, %8, %12 : vector<8x256xi1>, vector<8x256xf32>
    %14 = arith.truncf %13 : vector<8x256xf32> to vector<8x256xbf16>
    %c1 = arith.constant 1 : index
    %c0_9 = arith.constant 0 : index
    %c0_10 = arith.constant 0 : index
    %15 = vector.load %arg2[%c1, %c0_9, %c0_10] : memref<7x256x256xbf16, #tpu.memory_space<vmem>>, vector<1x256x256xbf16>
    %16 = vector.shape_cast %15 : vector<1x256x256xbf16> to vector<256x256xbf16>
    %cst_11 = arith.constant dense<0.000000e+00> : vector<8x256xf32>
    %17 = tpu.matmul %14, %16, %cst_11 {dimension_numbers = #tpu.dot_dimension_numbers<[1], [0], [0], [1], [0, 0, 1, 1], [], []>} : vector<8x256xbf16>, vector<256x256xbf16>, vector<8x256xf32> -> vector<8x256xf32>
    %c1_12 = arith.constant 1 : index
    %c0_13 = arith.constant 0 : index
    %c0_14 = arith.constant 0 : index
    %18 = vector.load %arg3[%c1_12, %c0_13, %c0_14] : memref<7x1x256xf32, #tpu.memory_space<vmem>>, vector<1x1x256xf32>
    %19 = vector.shape_cast %18 : vector<1x1x256xf32> to vector<1x256xf32>
    %20 = vector.broadcast %19 : vector<1x256xf32> to vector<8x256xf32>
    %21 = arith.addf %17, %20 : vector<8x256xf32>
    %cst_15 = arith.constant 0.000000e+00 : f32
    %22 = vector.broadcast %cst_15 : f32 to vector<8x256xf32>
    %23 = arith.cmpf oge, %21, %22 : vector<8x256xf32>
    %cst_16 = arith.constant 1.000000e-01 : f32
    %24 = vector.broadcast %cst_16 : f32 to vector<8x256xf32>
    %25 = arith.mulf %24, %21 : vector<8x256xf32>
    %26 = arith.select %23, %21, %25 : vector<8x256xi1>, vector<8x256xf32>
    %27 = arith.truncf %26 : vector<8x256xf32> to vector<8x256xbf16>
    %c2 = arith.constant 2 : index
    %c0_17 = arith.constant 0 : index
    %c0_18 = arith.constant 0 : index
    %28 = vector.load %arg2[%c2, %c0_17, %c0_18] : memref<7x256x256xbf16, #tpu.memory_space<vmem>>, vector<1x256x256xbf16>
    %29 = vector.shape_cast %28 : vector<1x256x256xbf16> to vector<256x256xbf16>
    %cst_19 = arith.constant dense<0.000000e+00> : vector<8x256xf32>
    %30 = tpu.matmul %27, %29, %cst_19 {dimension_numbers = #tpu.dot_dimension_numbers<[1], [0], [0], [1], [0, 0, 1, 1], [], []>} : vector<8x256xbf16>, vector<256x256xbf16>, vector<8x256xf32> -> vector<8x256xf32>
    %c2_20 = arith.constant 2 : index
    %c0_21 = arith.constant 0 : index
    %c0_22 = arith.constant 0 : index
    %31 = vector.load %arg3[%c2_20, %c0_21, %c0_22] : memref<7x1x256xf32, #tpu.memory_space<vmem>>, vector<1x1x256xf32>
    %32 = vector.shape_cast %31 : vector<1x1x256xf32> to vector<1x256xf32>
    %33 = vector.broadcast %32 : vector<1x256xf32> to vector<8x256xf32>
    %34 = arith.addf %30, %33 : vector<8x256xf32>
    %cst_23 = arith.constant 0.000000e+00 : f32
    %35 = vector.broadcast %cst_23 : f32 to vector<8x256xf32>
    %36 = arith.cmpf oge, %34, %35 : vector<8x256xf32>
    %cst_24 = arith.constant 1.000000e-01 : f32
    %37 = vector.broadcast %cst_24 : f32 to vector<8x256xf32>
    %38 = arith.mulf %37, %34 : vector<8x256xf32>
    %39 = arith.select %36, %34, %38 : vector<8x256xi1>, vector<8x256xf32>
    %40 = arith.truncf %39 : vector<8x256xf32> to vector<8x256xbf16>
    %c3 = arith.constant 3 : index
    %c0_25 = arith.constant 0 : index
    %c0_26 = arith.constant 0 : index
    %41 = vector.load %arg2[%c3, %c0_25, %c0_26] : memref<7x256x256xbf16, #tpu.memory_space<vmem>>, vector<1x256x256xbf16>
    %42 = vector.shape_cast %41 : vector<1x256x256xbf16> to vector<256x256xbf16>
    %cst_27 = arith.constant dense<0.000000e+00> : vector<8x256xf32>
    %43 = tpu.matmul %40, %42, %cst_27 {dimension_numbers = #tpu.dot_dimension_numbers<[1], [0], [0], [1], [0, 0, 1, 1], [], []>} : vector<8x256xbf16>, vector<256x256xbf16>, vector<8x256xf32> -> vector<8x256xf32>
    %c3_28 = arith.constant 3 : index
    %c0_29 = arith.constant 0 : index
    %c0_30 = arith.constant 0 : index
    %44 = vector.load %arg3[%c3_28, %c0_29, %c0_30] : memref<7x1x256xf32, #tpu.memory_space<vmem>>, vector<1x1x256xf32>
    %45 = vector.shape_cast %44 : vector<1x1x256xf32> to vector<1x256xf32>
    %46 = vector.broadcast %45 : vector<1x256xf32> to vector<8x256xf32>
    %47 = arith.addf %43, %46 : vector<8x256xf32>
    %cst_31 = arith.constant 0.000000e+00 : f32
    %48 = vector.broadcast %cst_31 : f32 to vector<8x256xf32>
    %49 = arith.cmpf oge, %47, %48 : vector<8x256xf32>
    %cst_32 = arith.constant 1.000000e-01 : f32
    %50 = vector.broadcast %cst_32 : f32 to vector<8x256xf32>
    %51 = arith.mulf %50, %47 : vector<8x256xf32>
    %52 = arith.select %49, %47, %51 : vector<8x256xi1>, vector<8x256xf32>
    %53 = arith.addf %52, %26 : vector<8x256xf32>
    %54 = arith.truncf %53 : vector<8x256xf32> to vector<8x256xbf16>
    %c4 = arith.constant 4 : index
    %c0_33 = arith.constant 0 : index
    %c0_34 = arith.constant 0 : index
    %55 = vector.load %arg2[%c4, %c0_33, %c0_34] : memref<7x256x256xbf16, #tpu.memory_space<vmem>>, vector<1x256x256xbf16>
    %56 = vector.shape_cast %55 : vector<1x256x256xbf16> to vector<256x256xbf16>
    %cst_35 = arith.constant dense<0.000000e+00> : vector<8x256xf32>
    %57 = tpu.matmul %54, %56, %cst_35 {dimension_numbers = #tpu.dot_dimension_numbers<[1], [0], [0], [1], [0, 0, 1, 1], [], []>} : vector<8x256xbf16>, vector<256x256xbf16>, vector<8x256xf32> -> vector<8x256xf32>
    %c4_36 = arith.constant 4 : index
    %c0_37 = arith.constant 0 : index
    %c0_38 = arith.constant 0 : index
    %58 = vector.load %arg3[%c4_36, %c0_37, %c0_38] : memref<7x1x256xf32, #tpu.memory_space<vmem>>, vector<1x1x256xf32>
    %59 = vector.shape_cast %58 : vector<1x1x256xf32> to vector<1x256xf32>
    %60 = vector.broadcast %59 : vector<1x256xf32> to vector<8x256xf32>
    %61 = arith.addf %57, %60 : vector<8x256xf32>
    %cst_39 = arith.constant 0.000000e+00 : f32
    %62 = vector.broadcast %cst_39 : f32 to vector<8x256xf32>
    %63 = arith.cmpf oge, %61, %62 : vector<8x256xf32>
    %cst_40 = arith.constant 1.000000e-01 : f32
    %64 = vector.broadcast %cst_40 : f32 to vector<8x256xf32>
    %65 = arith.mulf %64, %61 : vector<8x256xf32>
    %66 = arith.select %63, %61, %65 : vector<8x256xi1>, vector<8x256xf32>
    %67 = arith.addf %66, %13 : vector<8x256xf32>
    %68 = arith.truncf %67 : vector<8x256xf32> to vector<8x256xbf16>
    %c5 = arith.constant 5 : index
    %c0_41 = arith.constant 0 : index
    %c0_42 = arith.constant 0 : index
    %69 = vector.load %arg2[%c5, %c0_41, %c0_42] : memref<7x256x256xbf16, #tpu.memory_space<vmem>>, vector<1x256x256xbf16>
    %70 = vector.shape_cast %69 : vector<1x256x256xbf16> to vector<256x256xbf16>
    %cst_43 = arith.constant dense<0.000000e+00> : vector<8x256xf32>
    %71 = tpu.matmul %68, %70, %cst_43 {dimension_numbers = #tpu.dot_dimension_numbers<[1], [0], [0], [1], [0, 0, 1, 1], [], []>} : vector<8x256xbf16>, vector<256x256xbf16>, vector<8x256xf32> -> vector<8x256xf32>
    %c5_44 = arith.constant 5 : index
    %c0_45 = arith.constant 0 : index
    %c0_46 = arith.constant 0 : index
    %72 = vector.load %arg3[%c5_44, %c0_45, %c0_46] : memref<7x1x256xf32, #tpu.memory_space<vmem>>, vector<1x1x256xf32>
    %73 = vector.shape_cast %72 : vector<1x1x256xf32> to vector<1x256xf32>
    %74 = vector.broadcast %73 : vector<1x256xf32> to vector<8x256xf32>
    %75 = arith.addf %71, %74 : vector<8x256xf32>
    %cst_47 = arith.constant 0.000000e+00 : f32
    %76 = vector.broadcast %cst_47 : f32 to vector<8x256xf32>
    %77 = arith.cmpf oge, %75, %76 : vector<8x256xf32>
    %cst_48 = arith.constant 1.000000e-01 : f32
    %78 = vector.broadcast %cst_48 : f32 to vector<8x256xf32>
    %79 = arith.mulf %78, %75 : vector<8x256xf32>
    %80 = arith.select %77, %75, %79 : vector<8x256xi1>, vector<8x256xf32>
    %81 = arith.truncf %80 : vector<8x256xf32> to vector<8x256xbf16>
    %c6 = arith.constant 6 : index
    %c0_49 = arith.constant 0 : index
    %c0_50 = arith.constant 0 : index
    %82 = vector.load %arg2[%c6, %c0_49, %c0_50] : memref<7x256x256xbf16, #tpu.memory_space<vmem>>, vector<1x256x256xbf16>
    %83 = vector.shape_cast %82 : vector<1x256x256xbf16> to vector<256x256xbf16>
    %cst_51 = arith.constant dense<0.000000e+00> : vector<8x256xf32>
    %84 = tpu.matmul %81, %83, %cst_51 {dimension_numbers = #tpu.dot_dimension_numbers<[1], [0], [0], [1], [0, 0, 1, 1], [], []>} : vector<8x256xbf16>, vector<256x256xbf16>, vector<8x256xf32> -> vector<8x256xf32>
    %c6_52 = arith.constant 6 : index
    %c0_53 = arith.constant 0 : index
    %c0_54 = arith.constant 0 : index
    %85 = vector.load %arg3[%c6_52, %c0_53, %c0_54] : memref<7x1x256xf32, #tpu.memory_space<vmem>>, vector<1x1x256xf32>
    %86 = vector.shape_cast %85 : vector<1x1x256xf32> to vector<1x256xf32>
    %87 = vector.broadcast %86 : vector<1x256xf32> to vector<8x256xf32>
    %88 = arith.addf %84, %87 : vector<8x256xf32>
    %c0_55 = arith.constant 0 : index
    %c0_56 = arith.constant 0 : index
    %89 = vector.load %arg4[%c0_55, %c0_56] : memref<8x256xf32, #tpu.memory_space<vmem>>, vector<8x256xf32>
    tpu.vector_store %arg4[%c0_55, %c0_56], %88 {strides = array<i32>} : memref<8x256xf32, #tpu.memory_space<vmem>>, vector<8x256xf32>,
    return
  }
  func.func @transform_0(%arg0: i32) -> (i32, i32) {
    %c0_i32 = arith.constant 0 : i32
    %c0_i32_0 = arith.constant 0 : i32
    return %arg0, %c0_i32 : i32, i32
  }
  func.func @transform_1(%arg0: i32) -> (i32, i32, i32) {
    %c0_i32 = arith.constant 0 : i32
    %c0_i32_0 = arith.constant 0 : i32
    %c0_i32_1 = arith.constant 0 : i32
    %c0_i32_2 = arith.constant 0 : i32
    return %c0_i32, %c0_i32_0, %c0_i32_1 : i32, i32, i32
  }
  func.func @transform_2(%arg0: i32) -> (i32, i32, i32) {
    %c0_i32 = arith.constant 0 : i32
    %c0_i32_0 = arith.constant 0 : i32
    %c0_i32_1 = arith.constant 0 : i32
    %c0_i32_2 = arith.constant 0 : i32
    return %c0_i32, %c0_i32_0, %c0_i32_1 : i32, i32, i32
  }
  func.func @transform_3(%arg0: i32) -> (i32, i32) {
    %c0_i32 = arith.constant 0 : i32
    %c0_i32_0 = arith.constant 0 : i32
    return %arg0, %c0_i32 : i32, i32
  }
}

</mosaic_0001>

<llo_original>
// kernel: jpeg_forward.1
$region0: #{jpeg_forward.1}
  #allocation0 [shape = 'u32[]', space=smem, size = 0x4, offset = 0x4, fixed_abs, tag = 'smem constant byte address 0x4 - core index']
  #allocation1 [shape = 'u32[144,128]{1,0:T(1,128)}', space=vmem, size = 0x12000, scoped, tag = 'internal scratch']
  %s0 = inlined_call_operand.vmem [shape: f32[8,256], index: 0, kind: input, shape index: {}]
  %s1 = inlined_call_operand.vmem [shape: bf16[7,256,256], index: 1, kind: input, shape index: {}]
  %s2 = inlined_call_operand.vmem [shape: f32[7,1,256], index: 2, kind: input, shape index: {}]
  %s3 = inlined_call_operand.vmem [shape: f32[8,256], index: 3, kind: output, shape index: {}]
  %s4 = sld [smem:[#allocation0]]
  $region22: #{jpeg_forward.1} parent=0
    _
  %s6 = ssub.s32 1, %s4
  %s7 = scalar_select 0, %s6, %s4
  // Predicated region
  $region2: #{jpeg_forward.1} parent=0 // pred_check
    _
  $region3: #{jpeg_forward.1} parent=0 // pred_check_branch
    %9 = sbr.rel (0) target = $region5
  $region4: #{jpeg_forward.1} parent=0 // pred_region
    _
  $region5: #{jpeg_forward.1} parent=0 // pred_fallthru
    _
  // Predicated region
  $region6: #{jpeg_forward.1} parent=0 // pred_check
    _
  $region7: #{jpeg_forward.1} parent=0 // pred_check_branch
    %11 = sbr.rel (0) target = $region9
  $region8: #{jpeg_forward.1} parent=0 // pred_region
    _
  $region9: #{jpeg_forward.1} parent=0 // pred_fallthru
    _
  // Predicated region
  $region10: #{jpeg_forward.1} parent=0 // pred_check
    _
  $region11: #{jpeg_forward.1} parent=0 // pred_check_branch
    %13 = sbr.rel (0) target = $region13
  $region12: #{jpeg_forward.1} parent=0 // pred_region
    _
  $region13: #{jpeg_forward.1} parent=0 // pred_fallthru
    _
  %v14 = vld [vmem:[%s0] sm:$0xff]
  %v15 = vld [vmem:[%s0 + $0x8] sm:$0xff]
  %v16 = vpack.c.bf16 %v14, %v14
  %v17 = vpack.c.bf16 %v15, %v15
  %v18 = vld [vmem:[%s1] sm:$0xff]
  %v19 = vld [vmem:[%s1 + $0x8] sm:$0xff]
  %v20 = vld [vmem:[%s1 + $0x10] sm:$0xff]
  %v21 = vld [vmem:[%s1 + $0x18] sm:$0xff]
  %v22 = vld [vmem:[%s1 + $0x20] sm:$0xff]
  %v23 = vld [vmem:[%s1 + $0x28] sm:$0xff]
  %v24 = vld [vmem:[%s1 + $0x30] sm:$0xff]
  %v25 = vld [vmem:[%s1 + $0x38] sm:$0xff]
  %v26 = vld [vmem:[%s1 + $0x40] sm:$0xff]
  %v27 = vld [vmem:[%s1 + $0x48] sm:$0xff]
  %v28 = vld [vmem:[%s1 + $0x50] sm:$0xff]
  %v29 = vld [vmem:[%s1 + $0x58] sm:$0xff]
  %v30 = vld [vmem:[%s1 + $0x60] sm:$0xff]
  %v31 = vld [vmem:[%s1 + $0x68] sm:$0xff]
  %v32 = vld [vmem:[%s1 + $0x70] sm:$0xff]
  %v33 = vld [vmem:[%s1 + $0x78] sm:$0xff]
  %v34 = vld [vmem:[%s1 + $0x80] sm:$0xff]
  %v35 = vld [vmem:[%s1 + $0x88] sm:$0xff]
  %v36 = vld [vmem:[%s1 + $0x90] sm:$0xff]
  %v37 = vld [vmem:[%s1 + $0x98] sm:$0xff]
  %v38 = vld [vmem:[%s1 + $0xa0] sm:$0xff]
  %v39 = vld [vmem:[%s1 + $0xa8] sm:$0xff]
  %v40 = vld [vmem:[%s1 + $0xb0] sm:$0xff]
  %v41 = vld [vmem:[%s1 + $0xb8] sm:$0xff]
  %v42 = vld [vmem:[%s1 + $0xc0] sm:$0xff]
  %v43 = vld [vmem:[%s1 + $0xc8] sm:$0xff]
  %v44 = vld [vmem:[%s1 + $0xd0] sm:$0xff]
  %v45 = vld [vmem:[%s1 + $0xd8] sm:$0xff]
  %v46 = vld [vmem:[%s1 + $0xe0] sm:$0xff]
  %v47 = vld [vmem:[%s1 + $0xe8] sm:$0xff]
  %v48 = vld [vmem:[%s1 + $0xf0] sm:$0xff]
  %v49 = vld [vmem:[%s1 + $0xf8] sm:$0xff]
  %v50 = vld [vmem:[%s2] sm:$0x3]
  %v52 = vlaneseq
  %v53 = vshrl.u32 %v52, 7
  %v54 = vsub.s32 0, %v53
  %v55 = vrot.slane %v50, %v54
  %v56 = vlaneseq
  %v57 = vshrl.u32 %v56, 7
  %v58 = vsub.s32 1, %v57
  %v59 = vrot.slane %v50, %v58
  %v94 = vunpack.c.l.b16 %v18
  %v95 = vunpack.c.h.b16 %v18
  %v96 = vunpack.c.l.b16 %v19
  %v97 = vunpack.c.h.b16 %v19
  %v98 = vunpack.c.l.b16 %v20
  %v99 = vunpack.c.h.b16 %v20
  %v100 = vunpack.c.l.b16 %v21
  %v101 = vunpack.c.h.b16 %v21
  %v102 = vunpack.c.l.b16 %v22
  %v103 = vunpack.c.h.b16 %v22
  %v104 = vunpack.c.l.b16 %v23
  %v105 = vunpack.c.h.b16 %v23
  %v106 = vunpack.c.l.b16 %v24
  %v107 = vunpack.c.h.b16 %v24
  %v108 = vunpack.c.l.b16 %v25
  %v109 = vunpack.c.h.b16 %v25
  %v110 = vunpack.c.l.b16 %v26
  %v111 = vunpack.c.h.b16 %v26
  %v112 = vunpack.c.l.b16 %v27
  %v113 = vunpack.c.h.b16 %v27
  %v114 = vunpack.c.l.b16 %v28
  %v115 = vunpack.c.h.b16 %v28
  %v116 = vunpack.c.l.b16 %v29
  %v117 = vunpack.c.h.b16 %v29
  %v118 = vunpack.c.l.b16 %v30
  %v119 = vunpack.c.h.b16 %v30
  %v120 = vunpack.c.l.b16 %v31
  %v121 = vunpack.c.h.b16 %v31
  %v122 = vunpack.c.l.b16 %v32
  %v123 = vunpack.c.h.b16 %v32
  %v124 = vunpack.c.l.b16 %v33
  %v125 = vunpack.c.h.b16 %v33
  %v126 = vunpack.c.l.b16 %v34
  %v127 = vunpack.c.h.b16 %v34
  %v128 = vunpack.c.l.b16 %v35
  %v129 = vunpack.c.h.b16 %v35
  %v130 = vunpack.c.l.b16 %v36
  %v131 = vunpack.c.h.b16 %v36
  %v132 = vunpack.c.l.b16 %v37
  %v133 = vunpack.c.h.b16 %v37
  %v134 = vunpack.c.l.b16 %v38
  %v135 = vunpack.c.h.b16 %v38
  %v136 = vunpack.c.l.b16 %v39
  %v137 = vunpack.c.h.b16 %v39
  %v138 = vunpack.c.l.b16 %v40
  %v139 = vunpack.c.h.b16 %v40
  %v140 = vunpack.c.l.b16 %v41
  %v141 = vunpack.c.h.b16 %v41
  %v142 = vunpack.c.l.b16 %v42
  %v143 = vunpack.c.h.b16 %v42
  %v144 = vunpack.c.l.b16 %v43
  %v145 = vunpack.c.h.b16 %v43
  %v146 = vunpack.c.l.b16 %v44
  %v147 = vunpack.c.h.b16 %v44
  %v148 = vunpack.c.l.b16 %v45
  %v149 = vunpack.c.h.b16 %v45
  %v150 = vunpack.c.l.b16 %v46
  %v151 = vunpack.c.h.b16 %v46
  %v152 = vunpack.c.l.b16 %v47
  %v153 = vunpack.c.h.b16 %v47
  %v154 = vunpack.c.l.b16 %v48
  %v155 = vunpack.c.h.b16 %v48
  %v156 = vunpack.c.l.b16 %v49
  %v157 = vunpack.c.h.b16 %v49
  %v158 = vpack.c.b16 %v96, %v94
  %v159 = vpack.c.b16 %v97, %v95
  %v160 = vpack.c.b16 %v100, %v98
  %v161 = vpack.c.b16 %v101, %v99
  %v162 = vpack.c.b16 %v104, %v102
  %v163 = vpack.c.b16 %v105, %v103
  %v164 = vpack.c.b16 %v108, %v106
  %v165 = vpack.c.b16 %v109, %v107
  %v166 = vpack.c.b16 %v112, %v110
  %v167 = vpack.c.b16 %v113, %v111
  %v168 = vpack.c.b16 %v116, %v114
  %v169 = vpack.c.b16 %v117, %v115
  %v170 = vpack.c.b16 %v120, %v118
  %v171 = vpack.c.b16 %v121, %v119
  %v172 = vpack.c.b16 %v124, %v122
  %v173 = vpack.c.b16 %v125, %v123
  %v174 = vpack.c.b16 %v128, %v126
  %v175 = vpack.c.b16 %v129, %v127
  %v176 = vpack.c.b16 %v132, %v130
  %v177 = vpack.c.b16 %v133, %v131
  %v178 = vpack.c.b16 %v136, %v134
  %v179 = vpack.c.b16 %v137, %v135
  %v180 = vpack.c.b16 %v140, %v138
  %v181 = vpack.c.b16 %v141, %v139
  %v182 = vpack.c.b16 %v144, %v142
  %v183 = vpack.c.b16 %v145, %v143
  %v184 = vpack.c.b16 %v148, %v146
  %v185 = vpack.c.b16 %v149, %v147
  %v186 = vpack.c.b16 %v152, %v150
  %v187 = vpack.c.b16 %v153, %v151
  %v188 = vpack.c.b16 %v156, %v154
  %v189 = vpack.c.b16 %v157, %v155
  %222 = vmatprep.subr.bf16.mxu0 %v159
  %223 = vmatpush1.bf16.msra.mxu0 %v158
  %224 = vmatprep.subr.bf16.mxu0 %v161
  %225 = vmatpush1.bf16.msra.mxu0 %v160
  %226 = vmatprep.subr.bf16.mxu0 %v163
  %227 = vmatpush1.bf16.msra.mxu0 %v162
  %228 = vmatprep.subr.bf16.mxu0 %v165
  %229 = vmatpush1.bf16.msra.mxu0 %v164
  %230 = vmatprep.subr.bf16.mxu0 %v167
  %231 = vmatpush1.bf16.msra.mxu0 %v166
  %232 = vmatprep.subr.bf16.mxu0 %v169
  %233 = vmatpush1.bf16.msra.mxu0 %v168
  %234 = vmatprep.subr.bf16.mxu0 %v171
  %235 = vmatpush1.bf16.msra.mxu0 %v170
  %236 = vmatprep.subr.bf16.mxu0 %v173
  %237 = vmatpush1.bf16.msra.mxu0 %v172
  %238 = vmatprep.subr.bf16.mxu0 %v175
  %239 = vmatpush1.bf16.msra.mxu0 %v174
  %240 = vmatprep.subr.bf16.mxu0 %v177
  %241 = vmatpush1.bf16.msra.mxu0 %v176
  %242 = vmatprep.subr.bf16.mxu0 %v179
  %243 = vmatpush1.bf16.msra.mxu0 %v178
  %244 = vmatprep.subr.bf16.mxu0 %v181
  %245 = vmatpush1.bf16.msra.mxu0 %v180
  %246 = vmatprep.subr.bf16.mxu0 %v183
  %247 = vmatpush1.bf16.msra.mxu0 %v182
  %248 = vmatprep.subr.bf16.mxu0 %v185
  %249 = vmatpush1.bf16.msra.mxu0 %v184
  %250 = vmatprep.subr.bf16.mxu0 %v187
  %251 = vmatpush1.bf16.msra.mxu0 %v186
  %252 = vmatprep.subr.bf16.mxu0 %v189
  %253 = vmatpush1.bf16.msra.mxu0 %v188
  %254 = vmatprep.mubr.bf16.mxu0 %v17
  %255 = vmatmul.mubr.bf16.gmra.mrb[0].mxu0 %v16
  %v256 = vpop.f32.mrb[0].mxu0
  %v257 = vadd.f32 %v55, %v256
  %v258 = vpop.f32.mrb[0].mxu0
  %v259 = vadd.f32 %v59, %v258
  %v260 = vpop.f32.mrb[0].mxu0
  %v261 = vpop.f32.mrb[0].mxu0
  %262 = vdwg.mxu0
  %vm263 = vcmp.ge.f32.partialorder %v257, 0.0
  %vm264 = vcmp.ge.f32.partialorder %v259, 0.0
  %v265 = vmul.f32 %v257, 0.1
  %v266 = vmul.f32 %v259, 0.1
  %v267 = vsel %vm263, %v257, %v265
  %v268 = vsel %vm264, %v259, %v266
  %v269 = vpack.c.bf16 %v267, %v267
  %v270 = vpack.c.bf16 %v268, %v268
  %s271 = scalar_lea.vmem %s1, 256
  %v272 = vld [vmem:[%s271] sm:$0xff]
  %v273 = vld [vmem:[%s271 + $0x8] sm:$0xff]
  %v274 = vld [vmem:[%s271 + $0x10] sm:$0xff]
  %v275 = vld [vmem:[%s271 + $0x18] sm:$0xff]
  %v276 = vld [vmem:[%s271 + $0x20] sm:$0xff]
  %v277 = vld [vmem:[%s271 + $0x28] sm:$0xff]
  %v278 = vld [vmem:[%s271 + $0x30] sm:$0xff]
  %v279 = vld [vmem:[%s271 + $0x38] sm:$0xff]
  %v280 = vld [vmem:[%s271 + $0x40] sm:$0xff]
  %v281 = vld [vmem:[%s271 + $0x48] sm:$0xff]
  %v282 = vld [vmem:[%s271 + $0x50] sm:$0xff]
  %v283 = vld [vmem:[%s271 + $0x58] sm:$0xff]
  %v284 = vld [vmem:[%s271 + $0x60] sm:$0xff]
  %v285 = vld [vmem:[%s271 + $0x68] sm:$0xff]
  %v286 = vld [vmem:[%s271 + $0x70] sm:$0xff]
  %v287 = vld [vmem:[%s271 + $0x78] sm:$0xff]
  %v288 = vld [vmem:[%s271 + $0x80] sm:$0xff]
  %v289 = vld [vmem:[%s271 + $0x88] sm:$0xff]
  %v290 = vld [vmem:[%s271 + $0x90] sm:$0xff]
  %v291 = vld [vmem:[%s271 + $0x98] sm:$0xff]
  %v292 = vld [vmem:[%s271 + $0xa0] sm:$0xff]
  %v293 = vld [vmem:[%s271 + $0xa8] sm:$0xff]
  %v294 = vld [vmem:[%s271 + $0xb0] sm:$0xff]
  %v295 = vld [vmem:[%s271 + $0xb8] sm:$0xff]
  %v296 = vld [vmem:[%s271 + $0xc0] sm:$0xff]
  %v297 = vld [vmem:[%s271 + $0xc8] sm:$0xff]
  %v298 = vld [vmem:[%s271 + $0xd0] sm:$0xff]
  %v299 = vld [vmem:[%s271 + $0xd8] sm:$0xff]
  %v300 = vld [vmem:[%s271 + $0xe0] sm:$0xff]
  %v301 = vld [vmem:[%s271 + $0xe8] sm:$0xff]
  %v302 = vld [vmem:[%s271 + $0xf0] sm:$0xff]
  %v303 = vld [vmem:[%s271 + $0xf8] sm:$0xff]
  %s304 = scalar_lea.vmem %s2, 2
  %v305 = vld [vmem:[%s304] sm:$0x3]
  %v307 = vlaneseq
  %v308 = vshrl.u32 %v307, 7
  %v309 = vsub.s32 0, %v308
  %v310 = vrot.slane %v305, %v309
  %v311 = vlaneseq
  %v312 = vshrl.u32 %v311, 7
  %v313 = vsub.s32 1, %v312
  %v314 = vrot.slane %v305, %v313
  %v349 = vunpack.c.l.b16 %v272
  %v350 = vunpack.c.h.b16 %v272
  %v351 = vunpack.c.l.b16 %v273
  %v352 = vunpack.c.h.b16 %v273
  %v353 = vunpack.c.l.b16 %v274
  %v354 = vunpack.c.h.b16 %v274
  %v355 = vunpack.c.l.b16 %v275
  %v356 = vunpack.c.h.b16 %v275
  %v357 = vunpack.c.l.b16 %v276
  %v358 = vunpack.c.h.b16 %v276
  %v359 = vunpack.c.l.b16 %v277
  %v360 = vunpack.c.h.b16 %v277
  %v361 = vunpack.c.l.b16 %v278
  %v362 = vunpack.c.h.b16 %v278
  %v363 = vunpack.c.l.b16 %v279
  %v364 = vunpack.c.h.b16 %v279
  %v365 = vunpack.c.l.b16 %v280
  %v366 = vunpack.c.h.b16 %v280
  %v367 = vunpack.c.l.b16 %v281
  %v368 = vunpack.c.h.b16 %v281
  %v369 = vunpack.c.l.b16 %v282
  %v370 = vunpack.c.h.b16 %v282
  %v371 = vunpack.c.l.b16 %v283
  %v372 = vunpack.c.h.b16 %v283
  %v373 = vunpack.c.l.b16 %v284
  %v374 = vunpack.c.h.b16 %v284
  %v375 = vunpack.c.l.b16 %v285
  %v376 = vunpack.c.h.b16 %v285
  %v377 = vunpack.c.l.b16 %v286
  %v378 = vunpack.c.h.b16 %v286
  %v379 = vunpack.c.l.b16 %v287
  %v380 = vunpack.c.h.b16 %v287
  %v381 = vunpack.c.l.b16 %v288
  %v382 = vunpack.c.h.b16 %v288
  %v383 = vunpack.c.l.b16 %v289
  %v384 = vunpack.c.h.b16 %v289
  %v385 = vunpack.c.l.b16 %v290
  %v386 = vunpack.c.h.b16 %v290
  %v387 = vunpack.c.l.b16 %v291
  %v388 = vunpack.c.h.b16 %v291
  %v389 = vunpack.c.l.b16 %v292
  %v390 = vunpack.c.h.b16 %v292
  %v391 = vunpack.c.l.b16 %v293
  %v392 = vunpack.c.h.b16 %v293
  %v393 = vunpack.c.l.b16 %v294
  %v394 = vunpack.c.h.b16 %v294
  %v395 = vunpack.c.l.b16 %v295
  %v396 = vunpack.c.h.b16 %v295
  %v397 = vunpack.c.l.b16 %v296
  %v398 = vunpack.c.h.b16 %v296
  %v399 = vunpack.c.l.b16 %v297
  %v400 = vunpack.c.h.b16 %v297
  %v401 = vunpack.c.l.b16 %v298
  %v402 = vunpack.c.h.b16 %v298
  %v403 = vunpack.c.l.b16 %v299
  %v404 = vunpack.c.h.b16 %v299
  %v405 = vunpack.c.l.b16 %v300
  %v406 = vunpack.c.h.b16 %v300
  %v407 = vunpack.c.l.b16 %v301
  %v408 = vunpack.c.h.b16 %v301
  %v409 = vunpack.c.l.b16 %v302
  %v410 = vunpack.c.h.b16 %v302
  %v411 = vunpack.c.l.b16 %v303
  %v412 = vunpack.c.h.b16 %v303
  %v413 = vpack.c.b16 %v351, %v349
  %v414 = vpack.c.b16 %v352, %v350
  %v415 = vpack.c.b16 %v355, %v353
  %v416 = vpack.c.b16 %v356, %v354
  %v417 = vpack.c.b16 %v359, %v357
  %v418 = vpack.c.b16 %v360, %v358
  %v419 = vpack.c.b16 %v363, %v361
  %v420 = vpack.c.b16 %v364, %v362
  %v421 = vpack.c.b16 %v367, %v365
  %v422 = vpack.c.b16 %v368, %v366
  %v423 = vpack.c.b16 %v371, %v369
  %v424 = vpack.c.b16 %v372, %v370
  %v425 = vpack.c.b16 %v375, %v373
  %v426 = vpack.c.b16 %v376, %v374
  %v427 = vpack.c.b16 %v379, %v377
  %v428 = vpack.c.b16 %v380, %v378
  %v429 = vpack.c.b16 %v383, %v381
  %v430 = vpack.c.b16 %v384, %v382
  %v431 = vpack.c.b16 %v387, %v385
  %v432 = vpack.c.b16 %v388, %v386
  %v433 = vpack.c.b16 %v391, %v389
  %v434 = vpack.c.b16 %v392, %v390
  %v435 = vpack.c.b16 %v395, %v393
  %v436 = vpack.c.b16 %v396, %v394
  %v437 = vpack.c.b16 %v399, %v397
  %v438 = vpack.c.b16 %v400, %v398
  %v439 = vpack.c.b16 %v403, %v401
  %v440 = vpack.c.b16 %v404, %v402
  %v441 = vpack.c.b16 %v407, %v405
  %v442 = vpack.c.b16 %v408, %v406
  %v443 = vpack.c.b16 %v411, %v409
  %v444 = vpack.c.b16 %v412, %v410
  %477 = vmatprep.subr.bf16.mxu0 %v414
  %478 = vmatpush1.bf16.msra.mxu0 %v413
  %479 = vmatprep.subr.bf16.mxu0 %v416
  %480 = vmatpush1.bf16.msra.mxu0 %v415
  %481 = vmatprep.subr.bf16.mxu0 %v418
  %482 = vmatpush1.bf16.msra.mxu0 %v417
  %483 = vmatprep.subr.bf16.mxu0 %v420
  %484 = vmatpush1.bf16.msra.mxu0 %v419
  %485 = vmatprep.subr.bf16.mxu0 %v422
  %486 = vmatpush1.bf16.msra.mxu0 %v421
  %487 = vmatprep.subr.bf16.mxu0 %v424
  %488 = vmatpush1.bf16.msra.mxu0 %v423
  %489 = vmatprep.subr.bf16.mxu0 %v426
  %490 = vmatpush1.bf16.msra.mxu0 %v425
  %491 = vmatprep.subr.bf16.mxu0 %v428
  %492 = vmatpush1.bf16.msra.mxu0 %v427
  %493 = vmatprep.subr.bf16.mxu0 %v430
  %494 = vmatpush1.bf16.msra.mxu0 %v429
  %495 = vmatprep.subr.bf16.mxu0 %v432
  %496 = vmatpush1.bf16.msra.mxu0 %v431
  %497 = vmatprep.subr.bf16.mxu0 %v434
  %498 = vmatpush1.bf16.msra.mxu0 %v433
  %499 = vmatprep.subr.bf16.mxu0 %v436
  %500 = vmatpush1.bf16.msra.mxu0 %v435
  %501 = vmatprep.subr.bf16.mxu0 %v438
  %502 = vmatpush1.bf16.msra.mxu0 %v437
  %503 = vmatprep.subr.bf16.mxu0 %v440
  %504 = vmatpush1.bf16.msra.mxu0 %v439
  %505 = vmatprep.subr.bf16.mxu0 %v442
  %506 = vmatpush1.bf16.msra.mxu0 %v441
  %507 = vmatprep.subr.bf16.mxu0 %v444
  %508 = vmatpush1.bf16.msra.mxu0 %v443
  %509 = vmatprep.mubr.bf16.mxu0 %v270
  %510 = vmatmul.mubr.bf16.gmra.mrb[0].mxu0 %v269
  %v511 = vpop.f32.mrb[0].mxu0
  %v512 = vadd.f32 %v310, %v511
  %v513 = vpop.f32.mrb[0].mxu0
  %v514 = vadd.f32 %v314, %v513
  %v515 = vpop.f32.mrb[0].mxu0
  %v516 = vpop.f32.mrb[0].mxu0
  %517 = vdwg.mxu0
  %vm518 = vcmp.ge.f32.partialorder %v512, 0.0
  %vm519 = vcmp.ge.f32.partialorder %v514, 0.0
  %v520 = vmul.f32 %v512, 0.1
  %v521 = vmul.f32 %v514, 0.1
  %v522 = vsel %vm518, %v512, %v520
  %v523 = vsel %vm519, %v514, %v521
  %v524 = vpack.c.bf16 %v522, %v522
  %v525 = vpack.c.bf16 %v523, %v523
  %s526 = scalar_lea.vmem %s1, 512
  %v527 = vld [vmem:[%s526] sm:$0xff]
  %v528 = vld [vmem:[%s526 + $0x8] sm:$0xff]
  %v529 = vld [vmem:[%s526 + $0x10] sm:$0xff]
  %v530 = vld [vmem:[%s526 + $0x18] sm:$0xff]
  %v531 = vld [vmem:[%s526 + $0x20] sm:$0xff]
  %v532 = vld [vmem:[%s526 + $0x28] sm:$0xff]
  %v533 = vld [vmem:[%s526 + $0x30] sm:$0xff]
  %v534 = vld [vmem:[%s526 + $0x38] sm:$0xff]
  %v535 = vld [vmem:[%s526 + $0x40] sm:$0xff]
  %v536 = vld [vmem:[%s526 + $0x48] sm:$0xff]
  %v537 = vld [vmem:[%s526 + $0x50] sm:$0xff]
  %v538 = vld [vmem:[%s526 + $0x58] sm:$0xff]
  %v539 = vld [vmem:[%s526 + $0x60] sm:$0xff]
  %v540 = vld [vmem:[%s526 + $0x68] sm:$0xff]
  %v541 = vld [vmem:[%s526 + $0x70] sm:$0xff]
  %v542 = vld [vmem:[%s526 + $0x78] sm:$0xff]
  %v543 = vld [vmem:[%s526 + $0x80] sm:$0xff]
  %v544 = vld [vmem:[%s526 + $0x88] sm:$0xff]
  %v545 = vld [vmem:[%s526 + $0x90] sm:$0xff]
  %v546 = vld [vmem:[%s526 + $0x98] sm:$0xff]
  %v547 = vld [vmem:[%s526 + $0xa0] sm:$0xff]
  %v548 = vld [vmem:[%s526 + $0xa8] sm:$0xff]
  %v549 = vld [vmem:[%s526 + $0xb0] sm:$0xff]
  %v550 = vld [vmem:[%s526 + $0xb8] sm:$0xff]
  %v551 = vld [vmem:[%s526 + $0xc0] sm:$0xff]
  %v552 = vld [vmem:[%s526 + $0xc8] sm:$0xff]
  %v553 = vld [vmem:[%s526 + $0xd0] sm:$0xff]
  %v554 = vld [vmem:[%s526 + $0xd8] sm:$0xff]
  %v555 = vld [vmem:[%s526 + $0xe0] sm:$0xff]
  %v556 = vld [vmem:[%s526 + $0xe8] sm:$0xff]
  %v557 = vld [vmem:[%s526 + $0xf0] sm:$0xff]
  %v558 = vld [vmem:[%s526 + $0xf8] sm:$0xff]
  %s559 = scalar_lea.vmem %s2, 4
  %v560 = vld [vmem:[%s559] sm:$0x3]
  %v562 = vlaneseq
  %v563 = vshrl.u32 %v562, 7
  %v564 = vsub.s32 0, %v563
  %v565 = vrot.slane %v560, %v564
  %v566 = vlaneseq
  %v567 = vshrl.u32 %v566, 7
  %v568 = vsub.s32 1, %v567
  %v569 = vrot.slane %v560, %v568
  %v604 = vunpack.c.l.b16 %v527
  %v605 = vunpack.c.h.b16 %v527
  %v606 = vunpack.c.l.b16 %v528
  %v607 = vunpack.c.h.b16 %v528
  %v608 = vunpack.c.l.b16 %v529
  %v609 = vunpack.c.h.b16 %v529
  %v610 = vunpack.c.l.b16 %v530
  %v611 = vunpack.c.h.b16 %v530
  %v612 = vunpack.c.l.b16 %v531
  %v613 = vunpack.c.h.b16 %v531
  %v614 = vunpack.c.l.b16 %v532
  %v615 = vunpack.c.h.b16 %v532
  %v616 = vunpack.c.l.b16 %v533
  %v617 = vunpack.c.h.b16 %v533
  %v618 = vunpack.c.l.b16 %v534
  %v619 = vunpack.c.h.b16 %v534
  %v620 = vunpack.c.l.b16 %v535
  %v621 = vunpack.c.h.b16 %v535
  %v622 = vunpack.c.l.b16 %v536
  %v623 = vunpack.c.h.b16 %v536
  %v624 = vunpack.c.l.b16 %v537
  %v625 = vunpack.c.h.b16 %v537
  %v626 = vunpack.c.l.b16 %v538
  %v627 = vunpack.c.h.b16 %v538
  %v628 = vunpack.c.l.b16 %v539
  %v629 = vunpack.c.h.b16 %v539
  %v630 = vunpack.c.l.b16 %v540
  %v631 = vunpack.c.h.b16 %v540
  %v632 = vunpack.c.l.b16 %v541
  %v633 = vunpack.c.h.b16 %v541
  %v634 = vunpack.c.l.b16 %v542
  %v635 = vunpack.c.h.b16 %v542
  %v636 = vunpack.c.l.b16 %v543
  %v637 = vunpack.c.h.b16 %v543
  %v638 = vunpack.c.l.b16 %v544
  %v639 = vunpack.c.h.b16 %v544
  %v640 = vunpack.c.l.b16 %v545
  %v641 = vunpack.c.h.b16 %v545
  %v642 = vunpack.c.l.b16 %v546
  %v643 = vunpack.c.h.b16 %v546
  %v644 = vunpack.c.l.b16 %v547
  %v645 = vunpack.c.h.b16 %v547
  %v646 = vunpack.c.l.b16 %v548
  %v647 = vunpack.c.h.b16 %v548
  %v648 = vunpack.c.l.b16 %v549
  %v649 = vunpack.c.h.b16 %v549
  %v650 = vunpack.c.l.b16 %v550
  %v651 = vunpack.c.h.b16 %v550
  %v652 = vunpack.c.l.b16 %v551
  %v653 = vunpack.c.h.b16 %v551
  %v654 = vunpack.c.l.b16 %v552
  %v655 = vunpack.c.h.b16 %v552
  %v656 = vunpack.c.l.b16 %v553
  %v657 = vunpack.c.h.b16 %v553
  %v658 = vunpack.c.l.b16 %v554
  %v659 = vunpack.c.h.b16 %v554
  %v660 = vunpack.c.l.b16 %v555
  %v661 = vunpack.c.h.b16 %v555
  %v662 = vunpack.c.l.b16 %v556
  %v663 = vunpack.c.h.b16 %v556
  %v664 = vunpack.c.l.b16 %v557
  %v665 = vunpack.c.h.b16 %v557
  %v666 = vunpack.c.l.b16 %v558
  %v667 = vunpack.c.h.b16 %v558
  %v668 = vpack.c.b16 %v606, %v604
  %v669 = vpack.c.b16 %v607, %v605
  %v670 = vpack.c.b16 %v610, %v608
  %v671 = vpack.c.b16 %v611, %v609
  %v672 = vpack.c.b16 %v614, %v612
  %v673 = vpack.c.b16 %v615, %v613
  %v674 = vpack.c.b16 %v618, %v616
  %v675 = vpack.c.b16 %v619, %v617
  %v676 = vpack.c.b16 %v622, %v620
  %v677 = vpack.c.b16 %v623, %v621
  %v678 = vpack.c.b16 %v626, %v624
  %v679 = vpack.c.b16 %v627, %v625
  %v680 = vpack.c.b16 %v630, %v628
  %v681 = vpack.c.b16 %v631, %v629
  %v682 = vpack.c.b16 %v634, %v632
  %v683 = vpack.c.b16 %v635, %v633
  %v684 = vpack.c.b16 %v638, %v636
  %v685 = vpack.c.b16 %v639, %v637
  %v686 = vpack.c.b16 %v642, %v640
  %v687 = vpack.c.b16 %v643, %v641
  %v688 = vpack.c.b16 %v646, %v644
  %v689 = vpack.c.b16 %v647, %v645
  %v690 = vpack.c.b16 %v650, %v648
  %v691 = vpack.c.b16 %v651, %v649
  %v692 = vpack.c.b16 %v654, %v652
  %v693 = vpack.c.b16 %v655, %v653
  %v694 = vpack.c.b16 %v658, %v656
  %v695 = vpack.c.b16 %v659, %v657
  %v696 = vpack.c.b16 %v662, %v660
  %v697 = vpack.c.b16 %v663, %v661
  %v698 = vpack.c.b16 %v666, %v664
  %v699 = vpack.c.b16 %v667, %v665
  %732 = vmatprep.subr.bf16.mxu0 %v669
  %733 = vmatpush1.bf16.msra.mxu0 %v668
  %734 = vmatprep.subr.bf16.mxu0 %v671
  %735 = vmatpush1.bf16.msra.mxu0 %v670
  %736 = vmatprep.subr.bf16.mxu0 %v673
  %737 = vmatpush1.bf16.msra.mxu0 %v672
  %738 = vmatprep.subr.bf16.mxu0 %v675
  %739 = vmatpush1.bf16.msra.mxu0 %v674
  %740 = vmatprep.subr.bf16.mxu0 %v677
  %741 = vmatpush1.bf16.msra.mxu0 %v676
  %742 = vmatprep.subr.bf16.mxu0 %v679
  %743 = vmatpush1.bf16.msra.mxu0 %v678
  %744 = vmatprep.subr.bf16.mxu0 %v681
  %745 = vmatpush1.bf16.msra.mxu0 %v680
  %746 = vmatprep.subr.bf16.mxu0 %v683
  %747 = vmatpush1.bf16.msra.mxu0 %v682
  %748 = vmatprep.subr.bf16.mxu0 %v685
  %749 = vmatpush1.bf16.msra.mxu0 %v684
  %750 = vmatprep.subr.bf16.mxu0 %v687
  %751 = vmatpush1.bf16.msra.mxu0 %v686
  %752 = vmatprep.subr.bf16.mxu0 %v689
  %753 = vmatpush1.bf16.msra.mxu0 %v688
  %754 = vmatprep.subr.bf16.mxu0 %v691
  %755 = vmatpush1.bf16.msra.mxu0 %v690
  %756 = vmatprep.subr.bf16.mxu0 %v693
  %757 = vmatpush1.bf16.msra.mxu0 %v692
  %758 = vmatprep.subr.bf16.mxu0 %v695
  %759 = vmatpush1.bf16.msra.mxu0 %v694
  %760 = vmatprep.subr.bf16.mxu0 %v697
  %761 = vmatpush1.bf16.msra.mxu0 %v696
  %762 = vmatprep.subr.bf16.mxu0 %v699
  %763 = vmatpush1.bf16.msra.mxu0 %v698
  %764 = vmatprep.mubr.bf16.mxu0 %v525
  %765 = vmatmul.mubr.bf16.gmra.mrb[0].mxu0 %v524
  %v766 = vpop.f32.mrb[0].mxu0
  %v767 = vadd.f32 %v565, %v766
  %v768 = vpop.f32.mrb[0].mxu0
  %v769 = vadd.f32 %v569, %v768
  %v770 = vpop.f32.mrb[0].mxu0
  %v771 = vpop.f32.mrb[0].mxu0
  %772 = vdwg.mxu0
  %vm773 = vcmp.ge.f32.partialorder %v767, 0.0
  %vm774 = vcmp.ge.f32.partialorder %v769, 0.0
  %v775 = vmul.f32 %v767, 0.1
  %v776 = vmul.f32 %v769, 0.1
  %v777 = vsel %vm773, %v767, %v775
  %v778 = vsel %vm774, %v769, %v776
  %v779 = vpack.c.bf16 %v777, %v777
  %v780 = vpack.c.bf16 %v778, %v778
  %s781 = scalar_lea.vmem %s1, 768
  %v782 = vld [vmem:[%s781] sm:$0xff]
  %v783 = vld [vmem:[%s781 + $0x8] sm:$0xff]
  %v784 = vld [vmem:[%s781 + $0x10] sm:$0xff]
  %v785 = vld [vmem:[%s781 + $0x18] sm:$0xff]
  %v786 = vld [vmem:[%s781 + $0x20] sm:$0xff]
  %v787 = vld [vmem:[%s781 + $0x28] sm:$0xff]
  %v788 = vld [vmem:[%s781 + $0x30] sm:$0xff]
  %v789 = vld [vmem:[%s781 + $0x38] sm:$0xff]
  %v790 = vld [vmem:[%s781 + $0x40] sm:$0xff]
  %v791 = vld [vmem:[%s781 + $0x48] sm:$0xff]
  %v792 = vld [vmem:[%s781 + $0x50] sm:$0xff]
  %v793 = vld [vmem:[%s781 + $0x58] sm:$0xff]
  %v794 = vld [vmem:[%s781 + $0x60] sm:$0xff]
  %v795 = vld [vmem:[%s781 + $0x68] sm:$0xff]
  %v796 = vld [vmem:[%s781 + $0x70] sm:$0xff]
  %v797 = vld [vmem:[%s781 + $0x78] sm:$0xff]
  %v798 = vld [vmem:[%s781 + $0x80] sm:$0xff]
  %v799 = vld [vmem:[%s781 + $0x88] sm:$0xff]
  %v800 = vld [vmem:[%s781 + $0x90] sm:$0xff]
  %v801 = vld [vmem:[%s781 + $0x98] sm:$0xff]
  %v802 = vld [vmem:[%s781 + $0xa0] sm:$0xff]
  %v803 = vld [vmem:[%s781 + $0xa8] sm:$0xff]
  %v804 = vld [vmem:[%s781 + $0xb0] sm:$0xff]
  %v805 = vld [vmem:[%s781 + $0xb8] sm:$0xff]
  %v806 = vld [vmem:[%s781 + $0xc0] sm:$0xff]
  %v807 = vld [vmem:[%s781 + $0xc8] sm:$0xff]
  %v808 = vld [vmem:[%s781 + $0xd0] sm:$0xff]
  %v809 = vld [vmem:[%s781 + $0xd8] sm:$0xff]
  %v810 = vld [vmem:[%s781 + $0xe0] sm:$0xff]
  %v811 = vld [vmem:[%s781 + $0xe8] sm:$0xff]
  %v812 = vld [vmem:[%s781 + $0xf0] sm:$0xff]
  %v813 = vld [vmem:[%s781 + $0xf8] sm:$0xff]
  %s814 = scalar_lea.vmem %s2, 6
  %v815 = vld [vmem:[%s814] sm:$0x3]
  %v817 = vlaneseq
  %v818 = vshrl.u32 %v817, 7
  %v819 = vsub.s32 0, %v818
  %v820 = vrot.slane %v815, %v819
  %v821 = vlaneseq
  %v822 = vshrl.u32 %v821, 7
  %v823 = vsub.s32 1, %v822
  %v824 = vrot.slane %v815, %v823
  %v859 = vunpack.c.l.b16 %v782
  %v860 = vunpack.c.h.b16 %v782
  %v861 = vunpack.c.l.b16 %v783
  %v862 = vunpack.c.h.b16 %v783
  %v863 = vunpack.c.l.b16 %v784
  %v864 = vunpack.c.h.b16 %v784
  %v865 = vunpack.c.l.b16 %v785
  %v866 = vunpack.c.h.b16 %v785
  %v867 = vunpack.c.l.b16 %v786
  %v868 = vunpack.c.h.b16 %v786
  %v869 = vunpack.c.l.b16 %v787
  %v870 = vunpack.c.h.b16 %v787
  %v871 = vunpack.c.l.b16 %v788
  %v872 = vunpack.c.h.b16 %v788
  %v873 = vunpack.c.l.b16 %v789
  %v874 = vunpack.c.h.b16 %v789
  %v875 = vunpack.c.l.b16 %v790
  %v876 = vunpack.c.h.b16 %v790
  %v877 = vunpack.c.l.b16 %v791
  %v878 = vunpack.c.h.b16 %v791
  %v879 = vunpack.c.l.b16 %v792
  %v880 = vunpack.c.h.b16 %v792
  %v881 = vunpack.c.l.b16 %v793
  %v882 = vunpack.c.h.b16 %v793
  %v883 = vunpack.c.l.b16 %v794
  %v884 = vunpack.c.h.b16 %v794
  %v885 = vunpack.c.l.b16 %v795
  %v886 = vunpack.c.h.b16 %v795
  %v887 = vunpack.c.l.b16 %v796
  %v888 = vunpack.c.h.b16 %v796
  %v889 = vunpack.c.l.b16 %v797
  %v890 = vunpack.c.h.b16 %v797
  %v891 = vunpack.c.l.b16 %v798
  %v892 = vunpack.c.h.b16 %v798
  %v893 = vunpack.c.l.b16 %v799
  %v894 = vunpack.c.h.b16 %v799
  %v895 = vunpack.c.l.b16 %v800
  %v896 = vunpack.c.h.b16 %v800
  %v897 = vunpack.c.l.b16 %v801
  %v898 = vunpack.c.h.b16 %v801
  %v899 = vunpack.c.l.b16 %v802
  %v900 = vunpack.c.h.b16 %v802
  %v901 = vunpack.c.l.b16 %v803
  %v902 = vunpack.c.h.b16 %v803
  %v903 = vunpack.c.l.b16 %v804
  %v904 = vunpack.c.h.b16 %v804
  %v905 = vunpack.c.l.b16 %v805
  %v906 = vunpack.c.h.b16 %v805
  %v907 = vunpack.c.l.b16 %v806
  %v908 = vunpack.c.h.b16 %v806
  %v909 = vunpack.c.l.b16 %v807
  %v910 = vunpack.c.h.b16 %v807
  %v911 = vunpack.c.l.b16 %v808
  %v912 = vunpack.c.h.b16 %v808
  %v913 = vunpack.c.l.b16 %v809
  %v914 = vunpack.c.h.b16 %v809
  %v915 = vunpack.c.l.b16 %v810
  %v916 = vunpack.c.h.b16 %v810
  %v917 = vunpack.c.l.b16 %v811
  %v918 = vunpack.c.h.b16 %v811
  %v919 = vunpack.c.l.b16 %v812
  %v920 = vunpack.c.h.b16 %v812
  %v921 = vunpack.c.l.b16 %v813
  %v922 = vunpack.c.h.b16 %v813
  %v923 = vpack.c.b16 %v861, %v859
  %v924 = vpack.c.b16 %v862, %v860
  %v925 = vpack.c.b16 %v865, %v863
  %v926 = vpack.c.b16 %v866, %v864
  %v927 = vpack.c.b16 %v869, %v867
  %v928 = vpack.c.b16 %v870, %v868
  %v929 = vpack.c.b16 %v873, %v871
  %v930 = vpack.c.b16 %v874, %v872
  %v931 = vpack.c.b16 %v877, %v875
  %v932 = vpack.c.b16 %v878, %v876
  %v933 = vpack.c.b16 %v881, %v879
  %v934 = vpack.c.b16 %v882, %v880
  %v935 = vpack.c.b16 %v885, %v883
  %v936 = vpack.c.b16 %v886, %v884
  %v937 = vpack.c.b16 %v889, %v887
  %v938 = vpack.c.b16 %v890, %v888
  %v939 = vpack.c.b16 %v893, %v891
  %v940 = vpack.c.b16 %v894, %v892
  %v941 = vpack.c.b16 %v897, %v895
  %v942 = vpack.c.b16 %v898, %v896
  %v943 = vpack.c.b16 %v901, %v899
  %v944 = vpack.c.b16 %v902, %v900
  %v945 = vpack.c.b16 %v905, %v903
  %v946 = vpack.c.b16 %v906, %v904
  %v947 = vpack.c.b16 %v909, %v907
  %v948 = vpack.c.b16 %v910, %v908
  %v949 = vpack.c.b16 %v913, %v911
  %v950 = vpack.c.b16 %v914, %v912
  %v951 = vpack.c.b16 %v917, %v915
  %v952 = vpack.c.b16 %v918, %v916
  %v953 = vpack.c.b16 %v921, %v919
  %v954 = vpack.c.b16 %v922, %v920
  %987 = vmatprep.subr.bf16.mxu0 %v924
  %988 = vmatpush1.bf16.msra.mxu0 %v923
  %989 = vmatprep.subr.bf16.mxu0 %v926
  %990 = vmatpush1.bf16.msra.mxu0 %v925
  %991 = vmatprep.subr.bf16.mxu0 %v928
  %992 = vmatpush1.bf16.msra.mxu0 %v927
  %993 = vmatprep.subr.bf16.mxu0 %v930
  %994 = vmatpush1.bf16.msra.mxu0 %v929
  %995 = vmatprep.subr.bf16.mxu0 %v932
  %996 = vmatpush1.bf16.msra.mxu0 %v931
  %997 = vmatprep.subr.bf16.mxu0 %v934
  %998 = vmatpush1.bf16.msra.mxu0 %v933
  %999 = vmatprep.subr.bf16.mxu0 %v936
  %1000 = vmatpush1.bf16.msra.mxu0 %v935
  %1001 = vmatprep.subr.bf16.mxu0 %v938
  %1002 = vmatpush1.bf16.msra.mxu0 %v937
  %1003 = vmatprep.subr.bf16.mxu0 %v940
  %1004 = vmatpush1.bf16.msra.mxu0 %v939
  %1005 = vmatprep.subr.bf16.mxu0 %v942
  %1006 = vmatpush1.bf16.msra.mxu0 %v941
  %1007 = vmatprep.subr.bf16.mxu0 %v944
  %1008 = vmatpush1.bf16.msra.mxu0 %v943
  %1009 = vmatprep.subr.bf16.mxu0 %v946
  %1010 = vmatpush1.bf16.msra.mxu0 %v945
  %1011 = vmatprep.subr.bf16.mxu0 %v948
  %1012 = vmatpush1.bf16.msra.mxu0 %v947
  %1013 = vmatprep.subr.bf16.mxu0 %v950
  %1014 = vmatpush1.bf16.msra.mxu0 %v949
  %1015 = vmatprep.subr.bf16.mxu0 %v952
  %1016 = vmatpush1.bf16.msra.mxu0 %v951
  %1017 = vmatprep.subr.bf16.mxu0 %v954
  %1018 = vmatpush1.bf16.msra.mxu0 %v953
  %1019 = vmatprep.mubr.bf16.mxu0 %v780
  %1020 = vmatmul.mubr.bf16.gmra.mrb[0].mxu0 %v779
  %v1021 = vpop.f32.mrb[0].mxu0
  %v1022 = vadd.f32 %v820, %v1021
  %v1023 = vpop.f32.mrb[0].mxu0
  %v1024 = vadd.f32 %v824, %v1023
  %v1025 = vpop.f32.mrb[0].mxu0
  %v1026 = vpop.f32.mrb[0].mxu0
  %1027 = vdwg.mxu0
  %vm1028 = vcmp.ge.f32.partialorder %v1022, 0.0
  %vm1029 = vcmp.ge.f32.partialorder %v1024, 0.0
  %v1030 = vmul.f32 %v1022, 0.1
  %v1031 = vmul.f32 %v1024, 0.1
  %v1032 = vsel %vm1028, %v1022, %v1030
  %v1033 = vsel %vm1029, %v1024, %v1031
  %v1034 = vadd.f32 %v1032, %v522
  %v1035 = vadd.f32 %v1033, %v523
  %v1036 = vpack.c.bf16 %v1034, %v1034
  %v1037 = vpack.c.bf16 %v1035, %v1035
  %s1038 = scalar_lea.vmem %s1, 1024
  %v1039 = vld [vmem:[%s1038] sm:$0xff]
  %v1040 = vld [vmem:[%s1038 + $0x8] sm:$0xff]
  %v1041 = vld [vmem:[%s1038 + $0x10] sm:$0xff]
  %v1042 = vld [vmem:[%s1038 + $0x18] sm:$0xff]
  %v1043 = vld [vmem:[%s1038 + $0x20] sm:$0xff]
  %v1044 = vld [vmem:[%s1038 + $0x28] sm:$0xff]
  %v1045 = vld [vmem:[%s1038 + $0x30] sm:$0xff]
  %v1046 = vld [vmem:[%s1038 + $0x38] sm:$0xff]
  %v1047 = vld [vmem:[%s1038 + $0x40] sm:$0xff]
  %v1048 = vld [vmem:[%s1038 + $0x48] sm:$0xff]
  %v1049 = vld [vmem:[%s1038 + $0x50] sm:$0xff]
  %v1050 = vld [vmem:[%s1038 + $0x58] sm:$0xff]
  %v1051 = vld [vmem:[%s1038 + $0x60] sm:$0xff]
  %v1052 = vld [vmem:[%s1038 + $0x68] sm:$0xff]
  %v1053 = vld [vmem:[%s1038 + $0x70] sm:$0xff]
  %v1054 = vld [vmem:[%s1038 + $0x78] sm:$0xff]
  %v1055 = vld [vmem:[%s1038 + $0x80] sm:$0xff]
  %v1056 = vld [vmem:[%s1038 + $0x88] sm:$0xff]
  %v1057 = vld [vmem:[%s1038 + $0x90] sm:$0xff]
  %v1058 = vld [vmem:[%s1038 + $0x98] sm:$0xff]
  %v1059 = vld [vmem:[%s1038 + $0xa0] sm:$0xff]
  %v1060 = vld [vmem:[%s1038 + $0xa8] sm:$0xff]
  %v1061 = vld [vmem:[%s1038 + $0xb0] sm:$0xff]
  %v1062 = vld [vmem:[%s1038 + $0xb8] sm:$0xff]
  %v1063 = vld [vmem:[%s1038 + $0xc0] sm:$0xff]
  %v1064 = vld [vmem:[%s1038 + $0xc8] sm:$0xff]
  %v1065 = vld [vmem:[%s1038 + $0xd0] sm:$0xff]
  %v1066 = vld [vmem:[%s1038 + $0xd8] sm:$0xff]
  %v1067 = vld [vmem:[%s1038 + $0xe0] sm:$0xff]
  %v1068 = vld [vmem:[%s1038 + $0xe8] sm:$0xff]
  %v1069 = vld [vmem:[%s1038 + $0xf0] sm:$0xff]
  %v1070 = vld [vmem:[%s1038 + $0xf8] sm:$0xff]
  %s1071 = scalar_lea.vmem %s2, 8
  %v1072 = vld [vmem:[%s1071] sm:$0x3]
  %v1074 = vlaneseq
  %v1075 = vshrl.u32 %v1074, 7
  %v1076 = vsub.s32 0, %v1075
  %v1077 = vrot.slane %v1072, %v1076
  %v1078 = vlaneseq
  %v1079 = vshrl.u32 %v1078, 7
  %v1080 = vsub.s32 1, %v1079
  %v1081 = vrot.slane %v1072, %v1080
  %v1116 = vunpack.c.l.b16 %v1039
  %v1117 = vunpack.c.h.b16 %v1039
  %v1118 = vunpack.c.l.b16 %v1040
  %v1119 = vunpack.c.h.b16 %v1040
  %v1120 = vunpack.c.l.b16 %v1041
  %v1121 = vunpack.c.h.b16 %v1041
  %v1122 = vunpack.c.l.b16 %v1042
  %v1123 = vunpack.c.h.b16 %v1042
  %v1124 = vunpack.c.l.b16 %v1043
  %v1125 = vunpack.c.h.b16 %v1043
  %v1126 = vunpack.c.l.b16 %v1044
  %v1127 = vunpack.c.h.b16 %v1044
  %v1128 = vunpack.c.l.b16 %v1045
  %v1129 = vunpack.c.h.b16 %v1045
  %v1130 = vunpack.c.l.b16 %v1046
  %v1131 = vunpack.c.h.b16 %v1046
  %v1132 = vunpack.c.l.b16 %v1047
  %v1133 = vunpack.c.h.b16 %v1047
  %v1134 = vunpack.c.l.b16 %v1048
  %v1135 = vunpack.c.h.b16 %v1048
  %v1136 = vunpack.c.l.b16 %v1049
  %v1137 = vunpack.c.h.b16 %v1049
  %v1138 = vunpack.c.l.b16 %v1050
  %v1139 = vunpack.c.h.b16 %v1050
  %v1140 = vunpack.c.l.b16 %v1051
  %v1141 = vunpack.c.h.b16 %v1051
  %v1142 = vunpack.c.l.b16 %v1052
  %v1143 = vunpack.c.h.b16 %v1052
  %v1144 = vunpack.c.l.b16 %v1053
  %v1145 = vunpack.c.h.b16 %v1053
  %v1146 = vunpack.c.l.b16 %v1054
  %v1147 = vunpack.c.h.b16 %v1054
  %v1148 = vunpack.c.l.b16 %v1055
  %v1149 = vunpack.c.h.b16 %v1055
  %v1150 = vunpack.c.l.b16 %v1056
  %v1151 = vunpack.c.h.b16 %v1056
  %v1152 = vunpack.c.l.b16 %v1057
  %v1153 = vunpack.c.h.b16 %v1057
  %v1154 = vunpack.c.l.b16 %v1058
  %v1155 = vunpack.c.h.b16 %v1058
  %v1156 = vunpack.c.l.b16 %v1059
  %v1157 = vunpack.c.h.b16 %v1059
  %v1158 = vunpack.c.l.b16 %v1060
  %v1159 = vunpack.c.h.b16 %v1060
  %v1160 = vunpack.c.l.b16 %v1061
  %v1161 = vunpack.c.h.b16 %v1061
  %v1162 = vunpack.c.l.b16 %v1062
  %v1163 = vunpack.c.h.b16 %v1062
  %v1164 = vunpack.c.l.b16 %v1063
  %v1165 = vunpack.c.h.b16 %v1063
  %v1166 = vunpack.c.l.b16 %v1064
  %v1167 = vunpack.c.h.b16 %v1064
  %v1168 = vunpack.c.l.b16 %v1065
  %v1169 = vunpack.c.h.b16 %v1065
  %v1170 = vunpack.c.l.b16 %v1066
  %v1171 = vunpack.c.h.b16 %v1066
  %v1172 = vunpack.c.l.b16 %v1067
  %v1173 = vunpack.c.h.b16 %v1067
  %v1174 = vunpack.c.l.b16 %v1068
  %v1175 = vunpack.c.h.b16 %v1068
  %v1176 = vunpack.c.l.b16 %v1069
  %v1177 = vunpack.c.h.b16 %v1069
  %v1178 = vunpack.c.l.b16 %v1070
  %v1179 = vunpack.c.h.b16 %v1070
  %v1180 = vpack.c.b16 %v1118, %v1116
  %v1181 = vpack.c.b16 %v1119, %v1117
  %v1182 = vpack.c.b16 %v1122, %v1120
  %v1183 = vpack.c.b16 %v1123, %v1121
  %v1184 = vpack.c.b16 %v1126, %v1124
  %v1185 = vpack.c.b16 %v1127, %v1125
  %v1186 = vpack.c.b16 %v1130, %v1128
  %v1187 = vpack.c.b16 %v1131, %v1129
  %v1188 = vpack.c.b16 %v1134, %v1132
  %v1189 = vpack.c.b16 %v1135, %v1133
  %v1190 = vpack.c.b16 %v1138, %v1136
  %v1191 = vpack.c.b16 %v1139, %v1137
  %v1192 = vpack.c.b16 %v1142, %v1140
  %v1193 = vpack.c.b16 %v1143, %v1141
  %v1194 = vpack.c.b16 %v1146, %v1144
  %v1195 = vpack.c.b16 %v1147, %v1145
  %v1196 = vpack.c.b16 %v1150, %v1148
  %v1197 = vpack.c.b16 %v1151, %v1149
  %v1198 = vpack.c.b16 %v1154, %v1152
  %v1199 = vpack.c.b16 %v1155, %v1153
  %v1200 = vpack.c.b16 %v1158, %v1156
  %v1201 = vpack.c.b16 %v1159, %v1157
  %v1202 = vpack.c.b16 %v1162, %v1160
  %v1203 = vpack.c.b16 %v1163, %v1161
  %v1204 = vpack.c.b16 %v1166, %v1164
  %v1205 = vpack.c.b16 %v1167, %v1165
  %v1206 = vpack.c.b16 %v1170, %v1168
  %v1207 = vpack.c.b16 %v1171, %v1169
  %v1208 = vpack.c.b16 %v1174, %v1172
  %v1209 = vpack.c.b16 %v1175, %v1173
  %v1210 = vpack.c.b16 %v1178, %v1176
  %v1211 = vpack.c.b16 %v1179, %v1177
  %1244 = vmatprep.subr.bf16.mxu0 %v1181
  %1245 = vmatpush1.bf16.msra.mxu0 %v1180
  %1246 = vmatprep.subr.bf16.mxu0 %v1183
  %1247 = vmatpush1.bf16.msra.mxu0 %v1182
  %1248 = vmatprep.subr.bf16.mxu0 %v1185
  %1249 = vmatpush1.bf16.msra.mxu0 %v1184
  %1250 = vmatprep.subr.bf16.mxu0 %v1187
  %1251 = vmatpush1.bf16.msra.mxu0 %v1186
  %1252 = vmatprep.subr.bf16.mxu0 %v1189
  %1253 = vmatpush1.bf16.msra.mxu0 %v1188
  %1254 = vmatprep.subr.bf16.mxu0 %v1191
  %1255 = vmatpush1.bf16.msra.mxu0 %v1190
  %1256 = vmatprep.subr.bf16.mxu0 %v1193
  %1257 = vmatpush1.bf16.msra.mxu0 %v1192
  %1258 = vmatprep.subr.bf16.mxu0 %v1195
  %1259 = vmatpush1.bf16.msra.mxu0 %v1194
  %1260 = vmatprep.subr.bf16.mxu0 %v1197
  %1261 = vmatpush1.bf16.msra.mxu0 %v1196
  %1262 = vmatprep.subr.bf16.mxu0 %v1199
  %1263 = vmatpush1.bf16.msra.mxu0 %v1198
  %1264 = vmatprep.subr.bf16.mxu0 %v1201
  %1265 = vmatpush1.bf16.msra.mxu0 %v1200
  %1266 = vmatprep.subr.bf16.mxu0 %v1203
  %1267 = vmatpush1.bf16.msra.mxu0 %v1202
  %1268 = vmatprep.subr.bf16.mxu0 %v1205
  %1269 = vmatpush1.bf16.msra.mxu0 %v1204
  %1270 = vmatprep.subr.bf16.mxu0 %v1207
  %1271 = vmatpush1.bf16.msra.mxu0 %v1206
  %1272 = vmatprep.subr.bf16.mxu0 %v1209
  %1273 = vmatpush1.bf16.msra.mxu0 %v1208
  %1274 = vmatprep.subr.bf16.mxu0 %v1211
  %1275 = vmatpush1.bf16.msra.mxu0 %v1210
  %1276 = vmatprep.mubr.bf16.mxu0 %v1037
  %1277 = vmatmul.mubr.bf16.gmra.mrb[0].mxu0 %v1036
  %v1278 = vpop.f32.mrb[0].mxu0
  %v1279 = vadd.f32 %v1077, %v1278
  %v1280 = vpop.f32.mrb[0].mxu0
  %v1281 = vadd.f32 %v1081, %v1280
  %v1282 = vpop.f32.mrb[0].mxu0
  %v1283 = vpop.f32.mrb[0].mxu0
  %1284 = vdwg.mxu0
  %vm1285 = vcmp.ge.f32.partialorder %v1279, 0.0
  %vm1286 = vcmp.ge.f32.partialorder %v1281, 0.0
  %v1287 = vmul.f32 %v1279, 0.1
  %v1288 = vmul.f32 %v1281, 0.1
  %v1289 = vsel %vm1285, %v1279, %v1287
  %v1290 = vsel %vm1286, %v1281, %v1288
  %v1291 = vadd.f32 %v1289, %v267
  %v1292 = vadd.f32 %v1290, %v268
  %v1293 = vpack.c.bf16 %v1291, %v1291
  %v1294 = vpack.c.bf16 %v1292, %v1292
  %s1295 = scalar_lea.vmem %s1, 1280
  %v1296 = vld [vmem:[%s1295] sm:$0xff]
  %v1297 = vld [vmem:[%s1295 + $0x8] sm:$0xff]
  %v1298 = vld [vmem:[%s1295 + $0x10] sm:$0xff]
  %v1299 = vld [vmem:[%s1295 + $0x18] sm:$0xff]
  %v1300 = vld [vmem:[%s1295 + $0x20] sm:$0xff]
  %v1301 = vld [vmem:[%s1295 + $0x28] sm:$0xff]
  %v1302 = vld [vmem:[%s1295 + $0x30] sm:$0xff]
  %v1303 = vld [vmem:[%s1295 + $0x38] sm:$0xff]
  %v1304 = vld [vmem:[%s1295 + $0x40] sm:$0xff]
  %v1305 = vld [vmem:[%s1295 + $0x48] sm:$0xff]
  %v1306 = vld [vmem:[%s1295 + $0x50] sm:$0xff]
  %v1307 = vld [vmem:[%s1295 + $0x58] sm:$0xff]
  %v1308 = vld [vmem:[%s1295 + $0x60] sm:$0xff]
  %v1309 = vld [vmem:[%s1295 + $0x68] sm:$0xff]
  %v1310 = vld [vmem:[%s1295 + $0x70] sm:$0xff]
  %v1311 = vld [vmem:[%s1295 + $0x78] sm:$0xff]
  %v1312 = vld [vmem:[%s1295 + $0x80] sm:$0xff]
  %v1313 = vld [vmem:[%s1295 + $0x88] sm:$0xff]
  %v1314 = vld [vmem:[%s1295 + $0x90] sm:$0xff]
  %v1315 = vld [vmem:[%s1295 + $0x98] sm:$0xff]
  %v1316 = vld [vmem:[%s1295 + $0xa0] sm:$0xff]
  %v1317 = vld [vmem:[%s1295 + $0xa8] sm:$0xff]
  %v1318 = vld [vmem:[%s1295 + $0xb0] sm:$0xff]
  %v1319 = vld [vmem:[%s1295 + $0xb8] sm:$0xff]
  %v1320 = vld [vmem:[%s1295 + $0xc0] sm:$0xff]
  %v1321 = vld [vmem:[%s1295 + $0xc8] sm:$0xff]
  %v1322 = vld [vmem:[%s1295 + $0xd0] sm:$0xff]
  %v1323 = vld [vmem:[%s1295 + $0xd8] sm:$0xff]
  %v1324 = vld [vmem:[%s1295 + $0xe0] sm:$0xff]
  %v1325 = vld [vmem:[%s1295 + $0xe8] sm:$0xff]
  %v1326 = vld [vmem:[%s1295 + $0xf0] sm:$0xff]
  %v1327 = vld [vmem:[%s1295 + $0xf8] sm:$0xff]
  %s1328 = scalar_lea.vmem %s2, 10
  %v1329 = vld [vmem:[%s1328] sm:$0x3]
  %v1331 = vlaneseq
  %v1332 = vshrl.u32 %v1331, 7
  %v1333 = vsub.s32 0, %v1332
  %v1334 = vrot.slane %v1329, %v1333
  %v1335 = vlaneseq
  %v1336 = vshrl.u32 %v1335, 7
  %v1337 = vsub.s32 1, %v1336
  %v1338 = vrot.slane %v1329, %v1337
  %v1373 = vunpack.c.l.b16 %v1296
  %v1374 = vunpack.c.h.b16 %v1296
  %v1375 = vunpack.c.l.b16 %v1297
  %v1376 = vunpack.c.h.b16 %v1297
  %v1377 = vunpack.c.l.b16 %v1298
  %v1378 = vunpack.c.h.b16 %v1298
  %v1379 = vunpack.c.l.b16 %v1299
  %v1380 = vunpack.c.h.b16 %v1299
  %v1381 = vunpack.c.l.b16 %v1300
  %v1382 = vunpack.c.h.b16 %v1300
  %v1383 = vunpack.c.l.b16 %v1301
  %v1384 = vunpack.c.h.b16 %v1301
  %v1385 = vunpack.c.l.b16 %v1302
  %v1386 = vunpack.c.h.b16 %v1302
  %v1387 = vunpack.c.l.b16 %v1303
  %v1388 = vunpack.c.h.b16 %v1303
  %v1389 = vunpack.c.l.b16 %v1304
  %v1390 = vunpack.c.h.b16 %v1304
  %v1391 = vunpack.c.l.b16 %v1305
  %v1392 = vunpack.c.h.b16 %v1305
  %v1393 = vunpack.c.l.b16 %v1306
  %v1394 = vunpack.c.h.b16 %v1306
  %v1395 = vunpack.c.l.b16 %v1307
  %v1396 = vunpack.c.h.b16 %v1307
  %v1397 = vunpack.c.l.b16 %v1308
  %v1398 = vunpack.c.h.b16 %v1308
  %v1399 = vunpack.c.l.b16 %v1309
  %v1400 = vunpack.c.h.b16 %v1309
  %v1401 = vunpack.c.l.b16 %v1310
  %v1402 = vunpack.c.h.b16 %v1310
  %v1403 = vunpack.c.l.b16 %v1311
  %v1404 = vunpack.c.h.b16 %v1311
  %v1405 = vunpack.c.l.b16 %v1312
  %v1406 = vunpack.c.h.b16 %v1312
  %v1407 = vunpack.c.l.b16 %v1313
  %v1408 = vunpack.c.h.b16 %v1313
  %v1409 = vunpack.c.l.b16 %v1314
  %v1410 = vunpack.c.h.b16 %v1314
  %v1411 = vunpack.c.l.b16 %v1315
  %v1412 = vunpack.c.h.b16 %v1315
  %v1413 = vunpack.c.l.b16 %v1316
  %v1414 = vunpack.c.h.b16 %v1316
  %v1415 = vunpack.c.l.b16 %v1317
  %v1416 = vunpack.c.h.b16 %v1317
  %v1417 = vunpack.c.l.b16 %v1318
  %v1418 = vunpack.c.h.b16 %v1318
  %v1419 = vunpack.c.l.b16 %v1319
  %v1420 = vunpack.c.h.b16 %v1319
  %v1421 = vunpack.c.l.b16 %v1320
  %v1422 = vunpack.c.h.b16 %v1320
  %v1423 = vunpack.c.l.b16 %v1321
  %v1424 = vunpack.c.h.b16 %v1321
  %v1425 = vunpack.c.l.b16 %v1322
  %v1426 = vunpack.c.h.b16 %v1322
  %v1427 = vunpack.c.l.b16 %v1323
  %v1428 = vunpack.c.h.b16 %v1323
  %v1429 = vunpack.c.l.b16 %v1324
  %v1430 = vunpack.c.h.b16 %v1324
  %v1431 = vunpack.c.l.b16 %v1325
  %v1432 = vunpack.c.h.b16 %v1325
  %v1433 = vunpack.c.l.b16 %v1326
  %v1434 = vunpack.c.h.b16 %v1326
  %v1435 = vunpack.c.l.b16 %v1327
  %v1436 = vunpack.c.h.b16 %v1327
  %v1437 = vpack.c.b16 %v1375, %v1373
  %v1438 = vpack.c.b16 %v1376, %v1374
  %v1439 = vpack.c.b16 %v1379, %v1377
  %v1440 = vpack.c.b16 %v1380, %v1378
  %v1441 = vpack.c.b16 %v1383, %v1381
  %v1442 = vpack.c.b16 %v1384, %v1382
  %v1443 = vpack.c.b16 %v1387, %v1385
  %v1444 = vpack.c.b16 %v1388, %v1386
  %v1445 = vpack.c.b16 %v1391, %v1389
  %v1446 = vpack.c.b16 %v1392, %v1390
  %v1447 = vpack.c.b16 %v1395, %v1393
  %v1448 = vpack.c.b16 %v1396, %v1394
  %v1449 = vpack.c.b16 %v1399, %v1397
  %v1450 = vpack.c.b16 %v1400, %v1398
  %v1451 = vpack.c.b16 %v1403, %v1401
  %v1452 = vpack.c.b16 %v1404, %v1402
  %v1453 = vpack.c.b16 %v1407, %v1405
  %v1454 = vpack.c.b16 %v1408, %v1406
  %v1455 = vpack.c.b16 %v1411, %v1409
  %v1456 = vpack.c.b16 %v1412, %v1410
  %v1457 = vpack.c.b16 %v1415, %v1413
  %v1458 = vpack.c.b16 %v1416, %v1414
  %v1459 = vpack.c.b16 %v1419, %v1417
  %v1460 = vpack.c.b16 %v1420, %v1418
  %v1461 = vpack.c.b16 %v1423, %v1421
  %v1462 = vpack.c.b16 %v1424, %v1422
  %v1463 = vpack.c.b16 %v1427, %v1425
  %v1464 = vpack.c.b16 %v1428, %v1426
  %v1465 = vpack.c.b16 %v1431, %v1429
  %v1466 = vpack.c.b16 %v1432, %v1430
  %v1467 = vpack.c.b16 %v1435, %v1433
  %v1468 = vpack.c.b16 %v1436, %v1434
  %1501 = vmatprep.subr.bf16.mxu0 %v1438
  %1502 = vmatpush1.bf16.msra.mxu0 %v1437
  %1503 = vmatprep.subr.bf16.mxu0 %v1440
  %1504 = vmatpush1.bf16.msra.mxu0 %v1439
  %1505 = vmatprep.subr.bf16.mxu0 %v1442
  %1506 = vmatpush1.bf16.msra.mxu0 %v1441
  %1507 = vmatprep.subr.bf16.mxu0 %v1444
  %1508 = vmatpush1.bf16.msra.mxu0 %v1443
  %1509 = vmatprep.subr.bf16.mxu0 %v1446
  %1510 = vmatpush1.bf16.msra.mxu0 %v1445
  %1511 = vmatprep.subr.bf16.mxu0 %v1448
  %1512 = vmatpush1.bf16.msra.mxu0 %v1447
  %1513 = vmatprep.subr.bf16.mxu0 %v1450
  %1514 = vmatpush1.bf16.msra.mxu0 %v1449
  %1515 = vmatprep.subr.bf16.mxu0 %v1452
  %1516 = vmatpush1.bf16.msra.mxu0 %v1451
  %1517 = vmatprep.subr.bf16.mxu0 %v1454
  %1518 = vmatpush1.bf16.msra.mxu0 %v1453
  %1519 = vmatprep.subr.bf16.mxu0 %v1456
  %1520 = vmatpush1.bf16.msra.mxu0 %v1455
  %1521 = vmatprep.subr.bf16.mxu0 %v1458
  %1522 = vmatpush1.bf16.msra.mxu0 %v1457
  %1523 = vmatprep.subr.bf16.mxu0 %v1460
  %1524 = vmatpush1.bf16.msra.mxu0 %v1459
  %1525 = vmatprep.subr.bf16.mxu0 %v1462
  %1526 = vmatpush1.bf16.msra.mxu0 %v1461
  %1527 = vmatprep.subr.bf16.mxu0 %v1464
  %1528 = vmatpush1.bf16.msra.mxu0 %v1463
  %1529 = vmatprep.subr.bf16.mxu0 %v1466
  %1530 = vmatpush1.bf16.msra.mxu0 %v1465
  %1531 = vmatprep.subr.bf16.mxu0 %v1468
  %1532 = vmatpush1.bf16.msra.mxu0 %v1467
  %1533 = vmatprep.mubr.bf16.mxu0 %v1294
  %1534 = vmatmul.mubr.bf16.gmra.mrb[0].mxu0 %v1293
  %v1535 = vpop.f32.mrb[0].mxu0
  %v1536 = vadd.f32 %v1334, %v1535
  %v1537 = vpop.f32.mrb[0].mxu0
  %v1538 = vadd.f32 %v1338, %v1537
  %v1539 = vpop.f32.mrb[0].mxu0
  %v1540 = vpop.f32.mrb[0].mxu0
  %1541 = vdwg.mxu0
  %vm1542 = vcmp.ge.f32.partialorder %v1536, 0.0
  %vm1543 = vcmp.ge.f32.partialorder %v1538, 0.0
  %v1544 = vmul.f32 %v1536, 0.1
  %v1545 = vmul.f32 %v1538, 0.1
  %v1546 = vsel %vm1542, %v1536, %v1544
  %v1547 = vsel %vm1543, %v1538, %v1545
  %v1548 = vpack.c.bf16 %v1546, %v1546
  %v1549 = vpack.c.bf16 %v1547, %v1547
  %s1550 = scalar_lea.vmem %s1, 1536
  %v1551 = vld [vmem:[%s1550] sm:$0xff]
  %v1552 = vld [vmem:[%s1550 + $0x8] sm:$0xff]
  %v1553 = vld [vmem:[%s1550 + $0x10] sm:$0xff]
  %v1554 = vld [vmem:[%s1550 + $0x18] sm:$0xff]
  %v1555 = vld [vmem:[%s1550 + $0x20] sm:$0xff]
  %v1556 = vld [vmem:[%s1550 + $0x28] sm:$0xff]
  %v1557 = vld [vmem:[%s1550 + $0x30] sm:$0xff]
  %v1558 = vld [vmem:[%s1550 + $0x38] sm:$0xff]
  %v1559 = vld [vmem:[%s1550 + $0x40] sm:$0xff]
  %v1560 = vld [vmem:[%s1550 + $0x48] sm:$0xff]
  %v1561 = vld [vmem:[%s1550 + $0x50] sm:$0xff]
  %v1562 = vld [vmem:[%s1550 + $0x58] sm:$0xff]
  %v1563 = vld [vmem:[%s1550 + $0x60] sm:$0xff]
  %v1564 = vld [vmem:[%s1550 + $0x68] sm:$0xff]
  %v1565 = vld [vmem:[%s1550 + $0x70] sm:$0xff]
  %v1566 = vld [vmem:[%s1550 + $0x78] sm:$0xff]
  %v1567 = vld [vmem:[%s1550 + $0x80] sm:$0xff]
  %v1568 = vld [vmem:[%s1550 + $0x88] sm:$0xff]
  %v1569 = vld [vmem:[%s1550 + $0x90] sm:$0xff]
  %v1570 = vld [vmem:[%s1550 + $0x98] sm:$0xff]
  %v1571 = vld [vmem:[%s1550 + $0xa0] sm:$0xff]
  %v1572 = vld [vmem:[%s1550 + $0xa8] sm:$0xff]
  %v1573 = vld [vmem:[%s1550 + $0xb0] sm:$0xff]
  %v1574 = vld [vmem:[%s1550 + $0xb8] sm:$0xff]
  %v1575 = vld [vmem:[%s1550 + $0xc0] sm:$0xff]
  %v1576 = vld [vmem:[%s1550 + $0xc8] sm:$0xff]
  %v1577 = vld [vmem:[%s1550 + $0xd0] sm:$0xff]
  %v1578 = vld [vmem:[%s1550 + $0xd8] sm:$0xff]
  %v1579 = vld [vmem:[%s1550 + $0xe0] sm:$0xff]
  %v1580 = vld [vmem:[%s1550 + $0xe8] sm:$0xff]
  %v1581 = vld [vmem:[%s1550 + $0xf0] sm:$0xff]
  %v1582 = vld [vmem:[%s1550 + $0xf8] sm:$0xff]
  %s1583 = scalar_lea.vmem %s2, 12
  %v1584 = vld [vmem:[%s1583] sm:$0x3]
  %v1586 = vlaneseq
  %v1587 = vshrl.u32 %v1586, 7
  %v1588 = vsub.s32 0, %v1587
  %v1589 = vrot.slane %v1584, %v1588
  %v1590 = vlaneseq
  %v1591 = vshrl.u32 %v1590, 7
  %v1592 = vsub.s32 1, %v1591
  %v1593 = vrot.slane %v1584, %v1592
  %v1628 = vunpack.c.l.b16 %v1551
  %v1629 = vunpack.c.h.b16 %v1551
  %v1630 = vunpack.c.l.b16 %v1552
  %v1631 = vunpack.c.h.b16 %v1552
  %v1632 = vunpack.c.l.b16 %v1553
  %v1633 = vunpack.c.h.b16 %v1553
  %v1634 = vunpack.c.l.b16 %v1554
  %v1635 = vunpack.c.h.b16 %v1554
  %v1636 = vunpack.c.l.b16 %v1555
  %v1637 = vunpack.c.h.b16 %v1555
  %v1638 = vunpack.c.l.b16 %v1556
  %v1639 = vunpack.c.h.b16 %v1556
  %v1640 = vunpack.c.l.b16 %v1557
  %v1641 = vunpack.c.h.b16 %v1557
  %v1642 = vunpack.c.l.b16 %v1558
  %v1643 = vunpack.c.h.b16 %v1558
  %v1644 = vunpack.c.l.b16 %v1559
  %v1645 = vunpack.c.h.b16 %v1559
  %v1646 = vunpack.c.l.b16 %v1560
  %v1647 = vunpack.c.h.b16 %v1560
  %v1648 = vunpack.c.l.b16 %v1561
  %v1649 = vunpack.c.h.b16 %v1561
  %v1650 = vunpack.c.l.b16 %v1562
  %v1651 = vunpack.c.h.b16 %v1562
  %v1652 = vunpack.c.l.b16 %v1563
  %v1653 = vunpack.c.h.b16 %v1563
  %v1654 = vunpack.c.l.b16 %v1564
  %v1655 = vunpack.c.h.b16 %v1564
  %v1656 = vunpack.c.l.b16 %v1565
  %v1657 = vunpack.c.h.b16 %v1565
  %v1658 = vunpack.c.l.b16 %v1566
  %v1659 = vunpack.c.h.b16 %v1566
  %v1660 = vunpack.c.l.b16 %v1567
  %v1661 = vunpack.c.h.b16 %v1567
  %v1662 = vunpack.c.l.b16 %v1568
  %v1663 = vunpack.c.h.b16 %v1568
  %v1664 = vunpack.c.l.b16 %v1569
  %v1665 = vunpack.c.h.b16 %v1569
  %v1666 = vunpack.c.l.b16 %v1570
  %v1667 = vunpack.c.h.b16 %v1570
  %v1668 = vunpack.c.l.b16 %v1571
  %v1669 = vunpack.c.h.b16 %v1571
  %v1670 = vunpack.c.l.b16 %v1572
  %v1671 = vunpack.c.h.b16 %v1572
  %v1672 = vunpack.c.l.b16 %v1573
  %v1673 = vunpack.c.h.b16 %v1573
  %v1674 = vunpack.c.l.b16 %v1574
  %v1675 = vunpack.c.h.b16 %v1574
  %v1676 = vunpack.c.l.b16 %v1575
  %v1677 = vunpack.c.h.b16 %v1575
  %v1678 = vunpack.c.l.b16 %v1576
  %v1679 = vunpack.c.h.b16 %v1576
  %v1680 = vunpack.c.l.b16 %v1577
  %v1681 = vunpack.c.h.b16 %v1577
  %v1682 = vunpack.c.l.b16 %v1578
  %v1683 = vunpack.c.h.b16 %v1578
  %v1684 = vunpack.c.l.b16 %v1579
  %v1685 = vunpack.c.h.b16 %v1579
  %v1686 = vunpack.c.l.b16 %v1580
  %v1687 = vunpack.c.h.b16 %v1580
  %v1688 = vunpack.c.l.b16 %v1581
  %v1689 = vunpack.c.h.b16 %v1581
  %v1690 = vunpack.c.l.b16 %v1582
  %v1691 = vunpack.c.h.b16 %v1582
  %v1692 = vpack.c.b16 %v1630, %v1628
  %v1693 = vpack.c.b16 %v1631, %v1629
  %v1694 = vpack.c.b16 %v1634, %v1632
  %v1695 = vpack.c.b16 %v1635, %v1633
  %v1696 = vpack.c.b16 %v1638, %v1636
  %v1697 = vpack.c.b16 %v1639, %v1637
  %v1698 = vpack.c.b16 %v1642, %v1640
  %v1699 = vpack.c.b16 %v1643, %v1641
  %v1700 = vpack.c.b16 %v1646, %v1644
  %v1701 = vpack.c.b16 %v1647, %v1645
  %v1702 = vpack.c.b16 %v1650, %v1648
  %v1703 = vpack.c.b16 %v1651, %v1649
  %v1704 = vpack.c.b16 %v1654, %v1652
  %v1705 = vpack.c.b16 %v1655, %v1653
  %v1706 = vpack.c.b16 %v1658, %v1656
  %v1707 = vpack.c.b16 %v1659, %v1657
  %v1708 = vpack.c.b16 %v1662, %v1660
  %v1709 = vpack.c.b16 %v1663, %v1661
  %v1710 = vpack.c.b16 %v1666, %v1664
  %v1711 = vpack.c.b16 %v1667, %v1665
  %v1712 = vpack.c.b16 %v1670, %v1668
  %v1713 = vpack.c.b16 %v1671, %v1669
  %v1714 = vpack.c.b16 %v1674, %v1672
  %v1715 = vpack.c.b16 %v1675, %v1673
  %v1716 = vpack.c.b16 %v1678, %v1676
  %v1717 = vpack.c.b16 %v1679, %v1677
  %v1718 = vpack.c.b16 %v1682, %v1680
  %v1719 = vpack.c.b16 %v1683, %v1681
  %v1720 = vpack.c.b16 %v1686, %v1684
  %v1721 = vpack.c.b16 %v1687, %v1685
  %v1722 = vpack.c.b16 %v1690, %v1688
  %v1723 = vpack.c.b16 %v1691, %v1689
  %1756 = vmatprep.subr.bf16.mxu0 %v1693
  %1757 = vmatpush1.bf16.msra.mxu0 %v1692
  %1758 = vmatprep.subr.bf16.mxu0 %v1695
  %1759 = vmatpush1.bf16.msra.mxu0 %v1694
  %1760 = vmatprep.subr.bf16.mxu0 %v1697
  %1761 = vmatpush1.bf16.msra.mxu0 %v1696
  %1762 = vmatprep.subr.bf16.mxu0 %v1699
  %1763 = vmatpush1.bf16.msra.mxu0 %v1698
  %1764 = vmatprep.subr.bf16.mxu0 %v1701
  %1765 = vmatpush1.bf16.msra.mxu0 %v1700
  %1766 = vmatprep.subr.bf16.mxu0 %v1703
  %1767 = vmatpush1.bf16.msra.mxu0 %v1702
  %1768 = vmatprep.subr.bf16.mxu0 %v1705
  %1769 = vmatpush1.bf16.msra.mxu0 %v1704
  %1770 = vmatprep.subr.bf16.mxu0 %v1707
  %1771 = vmatpush1.bf16.msra.mxu0 %v1706
  %1772 = vmatprep.subr.bf16.mxu0 %v1709
  %1773 = vmatpush1.bf16.msra.mxu0 %v1708
  %1774 = vmatprep.subr.bf16.mxu0 %v1711
  %1775 = vmatpush1.bf16.msra.mxu0 %v1710
  %1776 = vmatprep.subr.bf16.mxu0 %v1713
  %1777 = vmatpush1.bf16.msra.mxu0 %v1712
  %1778 = vmatprep.subr.bf16.mxu0 %v1715
  %1779 = vmatpush1.bf16.msra.mxu0 %v1714
  %1780 = vmatprep.subr.bf16.mxu0 %v1717
  %1781 = vmatpush1.bf16.msra.mxu0 %v1716
  %1782 = vmatprep.subr.bf16.mxu0 %v1719
  %1783 = vmatpush1.bf16.msra.mxu0 %v1718
  %1784 = vmatprep.subr.bf16.mxu0 %v1721
  %1785 = vmatpush1.bf16.msra.mxu0 %v1720
  %1786 = vmatprep.subr.bf16.mxu0 %v1723
  %1787 = vmatpush1.bf16.msra.mxu0 %v1722
  %1788 = vmatprep.mubr.bf16.mxu0 %v1549
  %1789 = vmatmul.mubr.bf16.gmra.mrb[0].mxu0 %v1548
  %v1790 = vpop.f32.mrb[0].mxu0
  %v1791 = vadd.f32 %v1589, %v1790
  %v1792 = vpop.f32.mrb[0].mxu0
  %v1793 = vadd.f32 %v1593, %v1792
  %v1794 = vpop.f32.mrb[0].mxu0
  %v1795 = vpop.f32.mrb[0].mxu0
  %1796 = vdwg.mxu0
  %1797 = vst [vmem:[%s3] sm:$0xff] %v1791
  %1798 = vst [vmem:[%s3 + $0x8] sm:$0xff] %v1793
  // Predicated region
  $region14: #{jpeg_forward.1} parent=0 // pred_check
    _
  $region15: #{jpeg_forward.1} parent=0 // pred_check_branch
    %1800 = sbr.rel (0) target = $region17
  $region16: #{jpeg_forward.1} parent=0 // pred_region
    _
  $region17: #{jpeg_forward.1} parent=0 // pred_fallthru
    _
  // Predicated region
  $region18: #{jpeg_forward.1} parent=0 // pred_check
    _
  $region19: #{jpeg_forward.1} parent=0 // pred_check_branch
    %1802 = sbr.rel (0) target = $region21
  $region20: #{jpeg_forward.1} parent=0 // pred_region
    _
  $region21: #{jpeg_forward.1} parent=0 // pred_fallthru
    _

</llo_original>
